<compile_context>
chip_gen: v5e
topology: v5e:2x2
jax: 0.10.0
libtpu: 0.0.40
codegen_flags: <defaults>
</compile_context>

<pallas_src>
import jax
import jax.numpy as jnp
from jax.experimental import pallas as pl
from jax.experimental.pallas import tpu as pltpu

# True (unpadded) model dims.
INPUT_DIM = 784   # 1*28*28 after nn.Flatten
R_DIM = 400
Z_DIM = 10

# Lane/MXU-friendly padded dims (multiples of 128 on the lane axis).
IN_P = 896        # 7*128
R_P = 512         # 4*128
Z_P = 128         # 1*128


def _round_up(n, m):
    return ((n + m - 1) // m) * m


def _scl_forward_kernel(x_ref, w1_ref, b1_ref, w2_ref, b2_ref, w3_ref, b3_ref,
                        o_ref):
    # encoder: Linear + ReLU, Linear + ReLU.
    # Weights arrive in VMEM as bf16; the activation operand is cast to bf16 so
    # the MXU runs bf16 x bf16 with an f32 accumulator.
    x = x_ref[...].astype(jnp.bfloat16)
    h1 = jnp.dot(x, w1_ref[...], preferred_element_type=jnp.float32)
    h1 = jnp.maximum(h1 + b1_ref[...], 0.0)

    h2 = jnp.dot(h1.astype(jnp.bfloat16), w2_ref[...],
                 preferred_element_type=jnp.float32)
    h2 = jnp.maximum(h2 + b2_ref[...], 0.0)

    # projector: Linear + L2-normalize over dim=1.  Padded z lanes are exactly
    # zero (zero weight cols, zero bias), so the squared sum over 128 padded
    # lanes equals the true 10-lane sum.
    z = jnp.dot(h2.astype(jnp.bfloat16), w3_ref[...],
                preferred_element_type=jnp.float32)
    z = z + b3_ref[...]
    ss = jnp.sum(z * z, axis=1, keepdims=True)
    # rsqrt(max(ss, 1e-24)) == 1 / max(||z||, 1e-12)  (torch F.normalize eps).
    z = z * jax.lax.rsqrt(jnp.maximum(ss, 1e-24))

    # filter: Filter() has no registered principal directions -> identity.
    # TODO(synk): Filter.add_dimension (SVD-based direction removal) is a
    # training-time side effect and is not part of the constructed forward.
    o_ref[...] = z


def prepare_params(params):
    """Zero-pad weights/biases to lane-aligned shapes; weights cast to bf16.

    Done once outside the jitted forward so per-call work is only the x pad.
    """
    w1, b1, w2, b2, w3, b3 = params

    def pad2(a, rows, cols, dtype):
        out = jnp.zeros((rows, cols), dtype)
        return out.at[:a.shape[0], :a.shape[1]].set(a.astype(dtype))

    return (
        pad2(w1, IN_P, R_P, jnp.bfloat16), pad2(b1, 1, R_P, jnp.float32),
        pad2(w2, R_P, R_P, jnp.bfloat16), pad2(b2, 1, R_P, jnp.float32),
        pad2(w3, R_P, Z_P, jnp.bfloat16), pad2(b3, 1, Z_P, jnp.float32),
    )


def scl_forward(x_nchw, padded_params):
    """x_nchw: [B, 1, 28, 28] float32. Returns normalized z: [B, 10]."""
    w1, b1, w2, b2, w3, b3 = padded_params
    B = x_nchw.shape[0]
    x = x_nchw.reshape(B, -1)  # nn.Flatten (glue, plain JAX)

    # Pad batch to a sublane multiple; pad input features to 7*128 with zeros.
    b_pad = _round_up(max(B, 8), 8)
    tb = min(b_pad, 256)            # batch tile; weights stay VMEM-resident
    b_pad = _round_up(b_pad, tb)
    x_p = jnp.zeros((b_pad, IN_P), jnp.float32)
    x_p = x_p.at[:B, :x.shape[1]].set(x)

    const = lambda shape: pl.BlockSpec(shape, lambda i: (0, 0))

    cost = pl.CostEstimate(
        flops=2 * B * (INPUT_DIM * R_DIM + R_DIM * R_DIM + R_DIM * Z_DIM),
        transcendentals=B,
        bytes_accessed=(2 * (IN_P * R_P + R_P * R_P + R_P * Z_P)   # bf16 weights
                        + 4 * (3 * R_P + Z_P)                       # f32 biases
                        + 4 * b_pad * (IN_P + Z_P)),                # x + out
    )

    out = pl.pallas_call(
        _scl_forward_kernel,
        out_shape=jax.ShapeDtypeStruct((b_pad, Z_P), jnp.float32),
        grid=(b_pad // tb,),
        in_specs=[
            pl.BlockSpec((tb, IN_P), lambda i: (i, 0)),
            const((IN_P, R_P)), const((1, R_P)),
            const((R_P, R_P)), const((1, R_P)),
            const((R_P, Z_P)), const((1, Z_P)),
        ],
        out_specs=pl.BlockSpec((tb, Z_P), lambda i: (i, 0)),
        compiler_params=pltpu.CompilerParams(
            dimension_semantics=("parallel",)),
        cost_estimate=cost,
    )(x_p, w1, b1, w2, b2, w3, b3)
    return out[:B, :Z_DIM]


def init_params(key, input_dim=INPUT_DIM, r_dim=R_DIM, z_dim=Z_DIM):
    """PyTorch-Linear-like init (uniform +-1/sqrt(fan_in)); weights stored
    as [in_features, out_features] (transpose of torch Linear.weight)."""
    ks = jax.random.split(key, 6)

    def lin(kw, kb, fan_in, fan_out):
        bound = 1.0 / jnp.sqrt(fan_in)
        w = jax.random.uniform(kw, (fan_in, fan_out), jnp.float32, -bound, bound)
        b = jax.random.uniform(kb, (1, fan_out), jnp.float32, -bound, bound)
        return w, b

    w1, b1 = lin(ks[0], ks[1], input_dim, r_dim)
    w2, b2 = lin(ks[2], ks[3], r_dim, r_dim)
    w3, b3 = lin(ks[4], ks[5], r_dim, z_dim)
    return (w1, b1, w2, b2, w3, b3)


def _reference_forward(x_nchw, params):
    """Pure-JAX f32 reference of the PyTorch forward (for tolerance check)."""
    w1, b1, w2, b2, w3, b3 = params
    x = x_nchw.reshape(x_nchw.shape[0], -1)
    h1 = jnp.maximum(x @ w1 + b1, 0.0)
    h2 = jnp.maximum(h1 @ w2 + b2, 0.0)
    z = h2 @ w3 + b3
    n = jnp.maximum(jnp.linalg.norm(z, axis=1, keepdims=True), 1e-12)
    return z / n


if __name__ == "__main__":
    key = jax.random.PRNGKey(0)
    k_x, k_p = jax.random.split(key)

    # NCHW image input, B=8, C=1, H=W=28 -> flattened 784 = input_dim
    x = jax.random.normal(k_x, (8, 1, 28, 28), jnp.float32)
    params = init_params(k_p)
    padded = prepare_params(params)

    z = jax.jit(scl_forward)(x, padded)
    z = jax.block_until_ready(z)

    assert z.shape == (8, Z_DIM)
    # rows are unit-norm after the F.normalize equivalent
    norms = jnp.linalg.norm(z, axis=1)
    assert bool(jnp.all(jnp.abs(norms - 1.0) < 1e-3)), norms
    # loose check vs f32 reference (bf16 weight storage introduces small error)
    z_ref = _reference_forward(x, params)
    assert bool(jnp.max(jnp.abs(z - z_ref)) < 0.1)
    print("KERNEL_OK")
</pallas_src>

<mosaic_0001>
module attributes {stable_mosaic.version = 11 : i64} {
  func.func @_scl_forward_kernel(%arg0: i32, %arg1: memref<8x896xf32, #tpu.memory_space<vmem>>, %arg2: memref<896x512xbf16, #tpu.memory_space<vmem>>, %arg3: memref<1x512xf32, #tpu.memory_space<vmem>>, %arg4: memref<512x512xbf16, #tpu.memory_space<vmem>>, %arg5: memref<1x512xf32, #tpu.memory_space<vmem>>, %arg6: memref<512x128xbf16, #tpu.memory_space<vmem>>, %arg7: memref<1x128xf32, #tpu.memory_space<vmem>>, %arg8: memref<8x128xf32, #tpu.memory_space<vmem>>) attributes {dimension_semantics = [#tpu.dimension_semantics<parallel>], iteration_bounds = array<i64: 1>, scalar_prefetch = 0 : i64, scratch_operands = 0 : i64, tpu.core_type = #tpu.core_type<tc>, window_params = [{transform_indices = @transform_0, window_bounds = array<i64: 8, 896>}, {pipeline_mode = #tpu.pipeline_mode<synchronous>, transform_indices = @transform_1, window_bounds = array<i64: 896, 512>}, {pipeline_mode = #tpu.pipeline_mode<synchronous>, transform_indices = @transform_2, window_bounds = array<i64: 1, 512>}, {pipeline_mode = #tpu.pipeline_mode<synchronous>, transform_indices = @transform_3, window_bounds = array<i64: 512, 512>}, {pipeline_mode = #tpu.pipeline_mode<synchronous>, transform_indices = @transform_4, window_bounds = array<i64: 1, 512>}, {pipeline_mode = #tpu.pipeline_mode<synchronous>, transform_indices = @transform_5, window_bounds = array<i64: 512, 128>}, {pipeline_mode = #tpu.pipeline_mode<synchronous>, transform_indices = @transform_6, window_bounds = array<i64: 1, 128>}, {transform_indices = @transform_7, window_bounds = array<i64: 8, 128>}]} {
    %c0 = arith.constant 0 : index
    %c0_0 = arith.constant 0 : index
    %0 = vector.load %arg1[%c0, %c0_0] : memref<8x896xf32, #tpu.memory_space<vmem>>, vector<8x896xf32>
    %1 = arith.truncf %0 : vector<8x896xf32> to vector<8x896xbf16>
    %c0_1 = arith.constant 0 : index
    %c0_2 = arith.constant 0 : index
    %2 = vector.load %arg2[%c0_1, %c0_2] : memref<896x512xbf16, #tpu.memory_space<vmem>>, vector<896x512xbf16>
    %cst = arith.constant dense<0.000000e+00> : vector<8x512xf32>
    %3 = tpu.matmul %1, %2, %cst {dimension_numbers = #tpu.dot_dimension_numbers<[1], [0], [0], [1], [0, 0, 1, 1], [], []>} : vector<8x896xbf16>, vector<896x512xbf16>, vector<8x512xf32> -> vector<8x512xf32>
    %c0_3 = arith.constant 0 : index
    %c0_4 = arith.constant 0 : index
    %4 = vector.load %arg3[%c0_3, %c0_4] : memref<1x512xf32, #tpu.memory_space<vmem>>, vector<1x512xf32>
    %5 = vector.broadcast %4 : vector<1x512xf32> to vector<8x512xf32>
    %6 = arith.addf %3, %5 : vector<8x512xf32>
    %cst_5 = arith.constant 0.000000e+00 : f32
    %7 = vector.broadcast %cst_5 : f32 to vector<8x512xf32>
    %8 = arith.maximumf %6, %7 : vector<8x512xf32>
    %9 = arith.truncf %8 : vector<8x512xf32> to vector<8x512xbf16>
    %c0_6 = arith.constant 0 : index
    %c0_7 = arith.constant 0 : index
    %10 = vector.load %arg4[%c0_6, %c0_7] : memref<512x512xbf16, #tpu.memory_space<vmem>>, vector<512x512xbf16>
    %cst_8 = arith.constant dense<0.000000e+00> : vector<8x512xf32>
    %11 = tpu.matmul %9, %10, %cst_8 {dimension_numbers = #tpu.dot_dimension_numbers<[1], [0], [0], [1], [0, 0, 1, 1], [], []>} : vector<8x512xbf16>, vector<512x512xbf16>, vector<8x512xf32> -> vector<8x512xf32>
    %c0_9 = arith.constant 0 : index
    %c0_10 = arith.constant 0 : index
    %12 = vector.load %arg5[%c0_9, %c0_10] : memref<1x512xf32, #tpu.memory_space<vmem>>, vector<1x512xf32>
    %13 = vector.broadcast %12 : vector<1x512xf32> to vector<8x512xf32>
    %14 = arith.addf %11, %13 : vector<8x512xf32>
    %cst_11 = arith.constant 0.000000e+00 : f32
    %15 = vector.broadcast %cst_11 : f32 to vector<8x512xf32>
    %16 = arith.maximumf %14, %15 : vector<8x512xf32>
    %17 = arith.truncf %16 : vector<8x512xf32> to vector<8x512xbf16>
    %c0_12 = arith.constant 0 : index
    %c0_13 = arith.constant 0 : index
    %18 = vector.load %arg6[%c0_12, %c0_13] : memref<512x128xbf16, #tpu.memory_space<vmem>>, vector<512x128xbf16>
    %cst_14 = arith.constant dense<0.000000e+00> : vector<8x128xf32>
    %19 = tpu.matmul %17, %18, %cst_14 {dimension_numbers = #tpu.dot_dimension_numbers<[1], [0], [0], [1], [0, 0, 1, 1], [], []>} : vector<8x512xbf16>, vector<512x128xbf16>, vector<8x128xf32> -> vector<8x128xf32>
    %c0_15 = arith.constant 0 : index
    %c0_16 = arith.constant 0 : index
    %20 = vector.load %arg7[%c0_15, %c0_16] : memref<1x128xf32, #tpu.memory_space<vmem>>, vector<1x128xf32>
    %21 = vector.broadcast %20 : vector<1x128xf32> to vector<8x128xf32>
    %22 = arith.addf %19, %21 : vector<8x128xf32>
    %23 = arith.mulf %22, %22 : vector<8x128xf32>
    %cst_17 = arith.constant dense<0.000000e+00> : vector<8xf32>
    %24 = vector.multi_reduction <add>, %23, %cst_17 [1] : vector<8x128xf32> to vector<8xf32>
    %25 = vector.shape_cast %24 : vector<8xf32> to vector<8x1xf32>
    %cst_18 = arith.constant 1.000000e-24 : f32
    %26 = vector.broadcast %cst_18 : f32 to vector<8x1xf32>
    %27 = arith.maximumf %25, %26 : vector<8x1xf32>
    %28 = math.rsqrt %27 : vector<8x1xf32>
    %29 = vector.broadcast %28 : vector<8x1xf32> to vector<8x128xf32>
    %30 = arith.mulf %22, %29 : vector<8x128xf32>
    %c0_19 = arith.constant 0 : index
    %c0_20 = arith.constant 0 : index
    %31 = vector.load %arg8[%c0_19, %c0_20] : memref<8x128xf32, #tpu.memory_space<vmem>>, vector<8x128xf32>
    tpu.vector_store %arg8[%c0_19, %c0_20], %30 {strides = array<i32>} : memref<8x128xf32, #tpu.memory_space<vmem>>, vector<8x128xf32>,
    return
  }
  func.func @transform_0(%arg0: i32) -> (i32, i32) {
    %c0_i32 = arith.constant 0 : i32
    %c0_i32_0 = arith.constant 0 : i32
    return %arg0, %c0_i32 : i32, i32
  }
  func.func @transform_1(%arg0: i32) -> (i32, i32) {
    %c0_i32 = arith.constant 0 : i32
    %c0_i32_0 = arith.constant 0 : i32
    %c0_i32_1 = arith.constant 0 : i32
    return %c0_i32, %c0_i32_0 : i32, i32
  }
  func.func @transform_2(%arg0: i32) -> (i32, i32) {
    %c0_i32 = arith.constant 0 : i32
    %c0_i32_0 = arith.constant 0 : i32
    %c0_i32_1 = arith.constant 0 : i32
    return %c0_i32, %c0_i32_0 : i32, i32
  }
  func.func @transform_3(%arg0: i32) -> (i32, i32) {
    %c0_i32 = arith.constant 0 : i32
    %c0_i32_0 = arith.constant 0 : i32
    %c0_i32_1 = arith.constant 0 : i32
    return %c0_i32, %c0_i32_0 : i32, i32
  }
  func.func @transform_4(%arg0: i32) -> (i32, i32) {
    %c0_i32 = arith.constant 0 : i32
    %c0_i32_0 = arith.constant 0 : i32
    %c0_i32_1 = arith.constant 0 : i32
    return %c0_i32, %c0_i32_0 : i32, i32
  }
  func.func @transform_5(%arg0: i32) -> (i32, i32) {
    %c0_i32 = arith.constant 0 : i32
    %c0_i32_0 = arith.constant 0 : i32
    %c0_i32_1 = arith.constant 0 : i32
    return %c0_i32, %c0_i32_0 : i32, i32
  }
  func.func @transform_6(%arg0: i32) -> (i32, i32) {
    %c0_i32 = arith.constant 0 : i32
    %c0_i32_0 = arith.constant 0 : i32
    %c0_i32_1 = arith.constant 0 : i32
    return %c0_i32, %c0_i32_0 : i32, i32
  }
  func.func @transform_7(%arg0: i32) -> (i32, i32) {
    %c0_i32 = arith.constant 0 : i32
    %c0_i32_0 = arith.constant 0 : i32
    return %arg0, %c0_i32 : i32, i32
  }
}

</mosaic_0001>

<llo_original>
// kernel: scl_forward.1
$region0: #{scl_forward.1}
  #allocation0 [shape = 'u32[]', space=smem, size = 0x4, offset = 0x4, fixed_abs, tag = 'smem constant byte address 0x4 - core index']
  #allocation1 [shape = 'u32[72,128]{1,0:T(1,128)}', space=vmem, size = 0x9000, scoped, tag = 'internal scratch']
  %s0 = inlined_call_operand.vmem [shape: f32[8,896], index: 0, kind: input, shape index: {}]
  %s1 = inlined_call_operand.hbm [shape: bf16[896,512], index: 1, kind: input, shape index: {}]
  %s2 = inlined_call_operand.vmem [shape: f32[1,512], index: 2, kind: input, shape index: {}]
  %s3 = inlined_call_operand.hbm [shape: bf16[512,512], index: 3, kind: input, shape index: {}]
  %s4 = inlined_call_operand.vmem [shape: f32[1,512], index: 4, kind: input, shape index: {}]
  %s5 = inlined_call_operand.vmem [shape: bf16[512,128], index: 5, kind: input, shape index: {}]
  %s6 = inlined_call_operand.vmem [shape: f32[1,128], index: 6, kind: input, shape index: {}]
  %s7 = inlined_call_operand.hbm [shape: f32[8,128], index: 7, kind: output, shape index: {}]
  %s8 = sld [smem:[#allocation0]]
  $region46: #{scl_forward.1} parent=0
    _
  %s10 = ssub.s32 1, %s8
  %s11 = scalar_select 0, %s10, %s8
  $region1: #{scl_forward.1} parent=0
    #allocation2 [shape = 'u8[917504]{0}', space=vmem, size = 0xe0000, scoped, tag = 'input window, operand 1, single buffered']
    #allocation3 [shape = 's32[1]{0}', space=sflag, size = 0x4, scoped, tag = 'scoped memory for scl_forward.1']
    #allocation4 [shape = 's32[1]{0}', space=sflag, size = 0x4, scoped, tag = 'scoped memory for scl_forward.1']
    #allocation5 [shape = 'u8[524288]{0}', space=vmem, size = 0x80000, scoped, tag = 'input window, operand 3, single buffered']
    #allocation6 [shape = 's32[1]{0}', space=sflag, size = 0x4, scoped, tag = 'scoped memory for scl_forward.1']
    #allocation7 [shape = 'u8[4096]{0}', space=vmem, size = 0x1000, scoped, tag = 'output window, operand 0, single buffered']
    %12 = vsyncpa [#allocation3], 0
    %13 = vsyncpa [#allocation6], 0
    %14 = vsyncpa [#allocation4], 0
    // Predicated region
    $region2: #{scl_forward.1} parent=1 // pred_check
      _
    $region3: #{scl_forward.1} parent=1 // pred_check_branch
      %16 = sbr.rel (0) target = $region5
    $region4: #{scl_forward.1} parent=1 // pred_region
      _
    $region5: #{scl_forward.1} parent=1 // pred_fallthru
      _
    // Predicated region
    $region6: #{scl_forward.1} parent=1 // pred_check
      _
    $region7: #{scl_forward.1} parent=1 // pred_check_branch
      %18 = sbr.rel (0) target = $region9
    $region8: #{scl_forward.1} parent=1 // pred_region
      %20 = vsyncadd [#allocation3], 0
      %s21 = sshll.u32 %s1, 4
      %s22 = int_to_ptr.hbm [resolvable:$true] %s21
      %s23 = sshll.u32 [#allocation2], 4
      %s24 = int_to_ptr.vmem [resolvable:$true] %s23
      %29 = dma.hbm_to_vmem [thread:$0]  %s22, 28672, %s24, [#allocation3], 256, 256, 16
    $region9: #{scl_forward.1} parent=1 // pred_fallthru
      _
    // Predicated region
    $region10: #{scl_forward.1} parent=1 // pred_check
      _
    $region11: #{scl_forward.1} parent=1 // pred_check_branch
      %31 = sbr.rel (0) target = $region13
    $region12: #{scl_forward.1} parent=1 // pred_region
      _
    $region13: #{scl_forward.1} parent=1 // pred_fallthru
      _
    // Predicated region
    $region14: #{scl_forward.1} parent=1 // pred_check
      _
    $region15: #{scl_forward.1} parent=1 // pred_check_branch
      %33 = sbr.rel (0) target = $region17
    $region16: #{scl_forward.1} parent=1 // pred_region
      %35 = vsyncadd [#allocation6], 0
      %s36 = sshll.u32 %s3, 4
      %s37 = int_to_ptr.hbm [resolvable:$true] %s36
      %s38 = sshll.u32 [#allocation5], 4
      %s39 = int_to_ptr.vmem [resolvable:$true] %s38
      %44 = dma.hbm_to_vmem [thread:$0]  %s37, 16384, %s39, [#allocation6], 256, 256, 16
    $region17: #{scl_forward.1} parent=1 // pred_fallthru
      _
    // Predicated region
    $region18: #{scl_forward.1} parent=1 // pred_check
      _
    $region19: #{scl_forward.1} parent=1 // pred_check_branch
      %46 = sbr.rel (0) target = $region21
    $region20: #{scl_forward.1} parent=1 // pred_region
      _
    $region21: #{scl_forward.1} parent=1 // pred_fallthru
      _
    // Predicated region
    $region22: #{scl_forward.1} parent=1 // pred_check
      _
    $region23: #{scl_forward.1} parent=1 // pred_check_branch
      %48 = sbr.rel (0) target = $region25
    $region24: #{scl_forward.1} parent=1 // pred_region
      _
    $region25: #{scl_forward.1} parent=1 // pred_fallthru
      _
    // Predicated region
    $region26: #{scl_forward.1} parent=1 // pred_check
      _
    $region27: #{scl_forward.1} parent=1 // pred_check_branch
      %50 = sbr.rel (0) target = $region29
    $region28: #{scl_forward.1} parent=1 // pred_region
      _
    $region29: #{scl_forward.1} parent=1 // pred_fallthru
      _
    // Predicated region
    $region30: #{scl_forward.1} parent=1 // pred_check
      _
    $region31: #{scl_forward.1} parent=1 // pred_check_branch
      %52 = sbr.rel (0) target = $region33
    $region32: #{scl_forward.1} parent=1 // pred_region
      %54 = dma.done [#allocation3], 28672
    $region33: #{scl_forward.1} parent=1 // pred_fallthru
      _
    // Predicated region
    $region34: #{scl_forward.1} parent=1 // pred_check
      _
    $region35: #{scl_forward.1} parent=1 // pred_check_branch
      %56 = sbr.rel (0) target = $region37
    $region36: #{scl_forward.1} parent=1 // pred_region
      %58 = dma.done [#allocation6], 16384
    $region37: #{scl_forward.1} parent=1 // pred_fallthru
      _
    %v59 = vld [vmem:[%s0] sm:$0xff]
    %v60 = vld [vmem:[%s0 + $0x8] sm:$0xff]
    %v61 = vld [vmem:[%s0 + $0x10] sm:$0xff]
    %v62 = vld [vmem:[%s0 + $0x18] sm:$0xff]
    %v63 = vld [vmem:[%s0 + $0x20] sm:$0xff]
    %v64 = vld [vmem:[%s0 + $0x28] sm:$0xff]
    %v65 = vld [vmem:[%s0 + $0x30] sm:$0xff]
    %v66 = vpack.c.bf16 %v59, %v59
    %v67 = vpack.c.bf16 %v60, %v60
    %v68 = vpack.c.bf16 %v61, %v61
    %v69 = vpack.c.bf16 %v62, %v62
    %v70 = vpack.c.bf16 %v63, %v63
    %v71 = vpack.c.bf16 %v64, %v64
    %v72 = vpack.c.bf16 %v65, %v65
    %v73 = vld [vmem:[#allocation2] sm:$0xff]
    %v74 = vld [vmem:[#allocation2 + $0x8] sm:$0xff]
    %v75 = vld [vmem:[#allocation2 + $0x10] sm:$0xff]
    %v76 = vld [vmem:[#allocation2 + $0x18] sm:$0xff]
    %v77 = vld [vmem:[#allocation2 + $0x20] sm:$0xff]
    %v78 = vld [vmem:[#allocation2 + $0x28] sm:$0xff]
    %v79 = vld [vmem:[#allocation2 + $0x30] sm:$0xff]
    %v80 = vld [vmem:[#allocation2 + $0x38] sm:$0xff]
    %v81 = vld [vmem:[#allocation2 + $0x40] sm:$0xff]
    %v82 = vld [vmem:[#allocation2 + $0x48] sm:$0xff]
    %v83 = vld [vmem:[#allocation2 + $0x50] sm:$0xff]
    %v84 = vld [vmem:[#allocation2 + $0x58] sm:$0xff]
    %v85 = vld [vmem:[#allocation2 + $0x60] sm:$0xff]
    %v86 = vld [vmem:[#allocation2 + $0x68] sm:$0xff]
    %v87 = vld [vmem:[#allocation2 + $0x70] sm:$0xff]
    %v88 = vld [vmem:[#allocation2 + $0x78] sm:$0xff]
    %v89 = vld [vmem:[#allocation2 + $0x80] sm:$0xff]
    %v90 = vld [vmem:[#allocation2 + $0x88] sm:$0xff]
    %v91 = vld [vmem:[#allocation2 + $0x90] sm:$0xff]
    %v92 = vld [vmem:[#allocation2 + $0x98] sm:$0xff]
    %v93 = vld [vmem:[#allocation2 + $0xa0] sm:$0xff]
    %v94 = vld [vmem:[#allocation2 + $0xa8] sm:$0xff]
    %v95 = vld [vmem:[#allocation2 + $0xb0] sm:$0xff]
    %v96 = vld [vmem:[#allocation2 + $0xb8] sm:$0xff]
    %v97 = vld [vmem:[#allocation2 + $0xc0] sm:$0xff]
    %v98 = vld [vmem:[#allocation2 + $0xc8] sm:$0xff]
    %v99 = vld [vmem:[#allocation2 + $0xd0] sm:$0xff]
    %v100 = vld [vmem:[#allocation2 + $0xd8] sm:$0xff]
    %v101 = vld [vmem:[#allocation2 + $0xe0] sm:$0xff]
    %v102 = vld [vmem:[#allocation2 + $0xe8] sm:$0xff]
    %v103 = vld [vmem:[#allocation2 + $0xf0] sm:$0xff]
    %v104 = vld [vmem:[#allocation2 + $0xf8] sm:$0xff]
    %v105 = vld [vmem:[#allocation2 + $0x100] sm:$0xff]
    %v106 = vld [vmem:[#allocation2 + $0x108] sm:$0xff]
    %v107 = vld [vmem:[#allocation2 + $0x110] sm:$0xff]
    %v108 = vld [vmem:[#allocation2 + $0x118] sm:$0xff]
    %v109 = vld [vmem:[#allocation2 + $0x120] sm:$0xff]
    %v110 = vld [vmem:[#allocation2 + $0x128] sm:$0xff]
    %v111 = vld [vmem:[#allocation2 + $0x130] sm:$0xff]
    %v112 = vld [vmem:[#allocation2 + $0x138] sm:$0xff]
    %v113 = vld [vmem:[#allocation2 + $0x140] sm:$0xff]
    %v114 = vld [vmem:[#allocation2 + $0x148] sm:$0xff]
    %v115 = vld [vmem:[#allocation2 + $0x150] sm:$0xff]
    %v116 = vld [vmem:[#allocation2 + $0x158] sm:$0xff]
    %v117 = vld [vmem:[#allocation2 + $0x160] sm:$0xff]
    %v118 = vld [vmem:[#allocation2 + $0x168] sm:$0xff]
    %v119 = vld [vmem:[#allocation2 + $0x170] sm:$0xff]
    %v120 = vld [vmem:[#allocation2 + $0x178] sm:$0xff]
    %v121 = vld [vmem:[#allocation2 + $0x180] sm:$0xff]
    %v122 = vld [vmem:[#allocation2 + $0x188] sm:$0xff]
    %v123 = vld [vmem:[#allocation2 + $0x190] sm:$0xff]
    %v124 = vld [vmem:[#allocation2 + $0x198] sm:$0xff]
    %v125 = vld [vmem:[#allocation2 + $0x1a0] sm:$0xff]
    %v126 = vld [vmem:[#allocation2 + $0x1a8] sm:$0xff]
    %v127 = vld [vmem:[#allocation2 + $0x1b0] sm:$0xff]
    %v128 = vld [vmem:[#allocation2 + $0x1b8] sm:$0xff]
    %v129 = vld [vmem:[#allocation2 + $0x1c0] sm:$0xff]
    %v130 = vld [vmem:[#allocation2 + $0x1c8] sm:$0xff]
    %v131 = vld [vmem:[#allocation2 + $0x1d0] sm:$0xff]
    %v132 = vld [vmem:[#allocation2 + $0x1d8] sm:$0xff]
    %v133 = vld [vmem:[#allocation2 + $0x1e0] sm:$0xff]
    %v134 = vld [vmem:[#allocation2 + $0x1e8] sm:$0xff]
    %v135 = vld [vmem:[#allocation2 + $0x1f0] sm:$0xff]
    %v136 = vld [vmem:[#allocation2 + $0x1f8] sm:$0xff]
    %v137 = vld [vmem:[#allocation2 + $0x200] sm:$0xff]
    %v138 = vld [vmem:[#allocation2 + $0x208] sm:$0xff]
    %v139 = vld [vmem:[#allocation2 + $0x210] sm:$0xff]
    %v140 = vld [vmem:[#allocation2 + $0x218] sm:$0xff]
    %v141 = vld [vmem:[#allocation2 + $0x220] sm:$0xff]
    %v142 = vld [vmem:[#allocation2 + $0x228] sm:$0xff]
    %v143 = vld [vmem:[#allocation2 + $0x230] sm:$0xff]
    %v144 = vld [vmem:[#allocation2 + $0x238] sm:$0xff]
    %v145 = vld [vmem:[#allocation2 + $0x240] sm:$0xff]
    %v146 = vld [vmem:[#allocation2 + $0x248] sm:$0xff]
    %v147 = vld [vmem:[#allocation2 + $0x250] sm:$0xff]
    %v148 = vld [vmem:[#allocation2 + $0x258] sm:$0xff]
    %v149 = vld [vmem:[#allocation2 + $0x260] sm:$0xff]
    %v150 = vld [vmem:[#allocation2 + $0x268] sm:$0xff]
    %v151 = vld [vmem:[#allocation2 + $0x270] sm:$0xff]
    %v152 = vld [vmem:[#allocation2 + $0x278] sm:$0xff]
    %v153 = vld [vmem:[#allocation2 + $0x280] sm:$0xff]
    %v154 = vld [vmem:[#allocation2 + $0x288] sm:$0xff]
    %v155 = vld [vmem:[#allocation2 + $0x290] sm:$0xff]
    %v156 = vld [vmem:[#allocation2 + $0x298] sm:$0xff]
    %v157 = vld [vmem:[#allocation2 + $0x2a0] sm:$0xff]
    %v158 = vld [vmem:[#allocation2 + $0x2a8] sm:$0xff]
    %v159 = vld [vmem:[#allocation2 + $0x2b0] sm:$0xff]
    %v160 = vld [vmem:[#allocation2 + $0x2b8] sm:$0xff]
    %v161 = vld [vmem:[#allocation2 + $0x2c0] sm:$0xff]
    %v162 = vld [vmem:[#allocation2 + $0x2c8] sm:$0xff]
    %v163 = vld [vmem:[#allocation2 + $0x2d0] sm:$0xff]
    %v164 = vld [vmem:[#allocation2 + $0x2d8] sm:$0xff]
    %v165 = vld [vmem:[#allocation2 + $0x2e0] sm:$0xff]
    %v166 = vld [vmem:[#allocation2 + $0x2e8] sm:$0xff]
    %v167 = vld [vmem:[#allocation2 + $0x2f0] sm:$0xff]
    %v168 = vld [vmem:[#allocation2 + $0x2f8] sm:$0xff]
    %v169 = vld [vmem:[#allocation2 + $0x300] sm:$0xff]
    %v170 = vld [vmem:[#allocation2 + $0x308] sm:$0xff]
    %v171 = vld [vmem:[#allocation2 + $0x310] sm:$0xff]
    %v172 = vld [vmem:[#allocation2 + $0x318] sm:$0xff]
    %v173 = vld [vmem:[#allocation2 + $0x320] sm:$0xff]
    %v174 = vld [vmem:[#allocation2 + $0x328] sm:$0xff]
    %v175 = vld [vmem:[#allocation2 + $0x330] sm:$0xff]
    %v176 = vld [vmem:[#allocation2 + $0x338] sm:$0xff]
    %v177 = vld [vmem:[#allocation2 + $0x340] sm:$0xff]
    %v178 = vld [vmem:[#allocation2 + $0x348] sm:$0xff]
    %v179 = vld [vmem:[#allocation2 + $0x350] sm:$0xff]
    %v180 = vld [vmem:[#allocation2 + $0x358] sm:$0xff]
    %v181 = vld [vmem:[#allocation2 + $0x360] sm:$0xff]
    %v182 = vld [vmem:[#allocation2 + $0x368] sm:$0xff]
    %v183 = vld [vmem:[#allocation2 + $0x370] sm:$0xff]
    %v184 = vld [vmem:[#allocation2 + $0x378] sm:$0xff]
    %v185 = vld [vmem:[#allocation2 + $0x380] sm:$0xff]
    %v186 = vld [vmem:[#allocation2 + $0x388] sm:$0xff]
    %v187 = vld [vmem:[#allocation2 + $0x390] sm:$0xff]
    %v188 = vld [vmem:[#allocation2 + $0x398] sm:$0xff]
    %v189 = vld [vmem:[#allocation2 + $0x3a0] sm:$0xff]
    %v190 = vld [vmem:[#allocation2 + $0x3a8] sm:$0xff]
    %v191 = vld [vmem:[#allocation2 + $0x3b0] sm:$0xff]
    %v192 = vld [vmem:[#allocation2 + $0x3b8] sm:$0xff]
    %v193 = vld [vmem:[#allocation2 + $0x3c0] sm:$0xff]
    %v194 = vld [vmem:[#allocation2 + $0x3c8] sm:$0xff]
    %v195 = vld [vmem:[#allocation2 + $0x3d0] sm:$0xff]
    %v196 = vld [vmem:[#allocation2 + $0x3d8] sm:$0xff]
    %v197 = vld [vmem:[#allocation2 + $0x3e0] sm:$0xff]
    %v198 = vld [vmem:[#allocation2 + $0x3e8] sm:$0xff]
    %v199 = vld [vmem:[#allocation2 + $0x3f0] sm:$0xff]
    %v200 = vld [vmem:[#allocation2 + $0x3f8] sm:$0xff]
    %v201 = vld [vmem:[#allocation2 + $0x400] sm:$0xff]
    %v202 = vld [vmem:[#allocation2 + $0x408] sm:$0xff]
    %v203 = vld [vmem:[#allocation2 + $0x410] sm:$0xff]
    %v204 = vld [vmem:[#allocation2 + $0x418] sm:$0xff]
    %v205 = vld [vmem:[#allocation2 + $0x420] sm:$0xff]
    %v206 = vld [vmem:[#allocation2 + $0x428] sm:$0xff]
    %v207 = vld [vmem:[#allocation2 + $0x430] sm:$0xff]
    %v208 = vld [vmem:[#allocation2 + $0x438] sm:$0xff]
    %v209 = vld [vmem:[#allocation2 + $0x440] sm:$0xff]
    %v210 = vld [vmem:[#allocation2 + $0x448] sm:$0xff]
    %v211 = vld [vmem:[#allocation2 + $0x450] sm:$0xff]
    %v212 = vld [vmem:[#allocation2 + $0x458] sm:$0xff]
    %v213 = vld [vmem:[#allocation2 + $0x460] sm:$0xff]
    %v214 = vld [vmem:[#allocation2 + $0x468] sm:$0xff]
    %v215 = vld [vmem:[#allocation2 + $0x470] sm:$0xff]
    %v216 = vld [vmem:[#allocation2 + $0x478] sm:$0xff]
    %v217 = vld [vmem:[#allocation2 + $0x480] sm:$0xff]
    %v218 = vld [vmem:[#allocation2 + $0x488] sm:$0xff]
    %v219 = vld [vmem:[#allocation2 + $0x490] sm:$0xff]
    %v220 = vld [vmem:[#allocation2 + $0x498] sm:$0xff]
    %v221 = vld [vmem:[#allocation2 + $0x4a0] sm:$0xff]
    %v222 = vld [vmem:[#allocation2 + $0x4a8] sm:$0xff]
    %v223 = vld [vmem:[#allocation2 + $0x4b0] sm:$0xff]
    %v224 = vld [vmem:[#allocation2 + $0x4b8] sm:$0xff]
    %v225 = vld [vmem:[#allocation2 + $0x4c0] sm:$0xff]
    %v226 = vld [vmem:[#allocation2 + $0x4c8] sm:$0xff]
    %v227 = vld [vmem:[#allocation2 + $0x4d0] sm:$0xff]
    %v228 = vld [vmem:[#allocation2 + $0x4d8] sm:$0xff]
    %v229 = vld [vmem:[#allocation2 + $0x4e0] sm:$0xff]
    %v230 = vld [vmem:[#allocation2 + $0x4e8] sm:$0xff]
    %v231 = vld [vmem:[#allocation2 + $0x4f0] sm:$0xff]
    %v232 = vld [vmem:[#allocation2 + $0x4f8] sm:$0xff]
    %v233 = vld [vmem:[#allocation2 + $0x500] sm:$0xff]
    %v234 = vld [vmem:[#allocation2 + $0x508] sm:$0xff]
    %v235 = vld [vmem:[#allocation2 + $0x510] sm:$0xff]
    %v236 = vld [vmem:[#allocation2 + $0x518] sm:$0xff]
    %v237 = vld [vmem:[#allocation2 + $0x520] sm:$0xff]
    %v238 = vld [vmem:[#allocation2 + $0x528] sm:$0xff]
    %v239 = vld [vmem:[#allocation2 + $0x530] sm:$0xff]
    %v240 = vld [vmem:[#allocation2 + $0x538] sm:$0xff]
    %v241 = vld [vmem:[#allocation2 + $0x540] sm:$0xff]
    %v242 = vld [vmem:[#allocation2 + $0x548] sm:$0xff]
    %v243 = vld [vmem:[#allocation2 + $0x550] sm:$0xff]
    %v244 = vld [vmem:[#allocation2 + $0x558] sm:$0xff]
    %v245 = vld [vmem:[#allocation2 + $0x560] sm:$0xff]
    %v246 = vld [vmem:[#allocation2 + $0x568] sm:$0xff]
    %v247 = vld [vmem:[#allocation2 + $0x570] sm:$0xff]
    %v248 = vld [vmem:[#allocation2 + $0x578] sm:$0xff]
    %v249 = vld [vmem:[#allocation2 + $0x580] sm:$0xff]
    %v250 = vld [vmem:[#allocation2 + $0x588] sm:$0xff]
    %v251 = vld [vmem:[#allocation2 + $0x590] sm:$0xff]
    %v252 = vld [vmem:[#allocation2 + $0x598] sm:$0xff]
    %v253 = vld [vmem:[#allocation2 + $0x5a0] sm:$0xff]
    %v254 = vld [vmem:[#allocation2 + $0x5a8] sm:$0xff]
    %v255 = vld [vmem:[#allocation2 + $0x5b0] sm:$0xff]
    %v256 = vld [vmem:[#allocation2 + $0x5b8] sm:$0xff]
    %v257 = vld [vmem:[#allocation2 + $0x5c0] sm:$0xff]
    %v258 = vld [vmem:[#allocation2 + $0x5c8] sm:$0xff]
    %v259 = vld [vmem:[#allocation2 + $0x5d0] sm:$0xff]
    %v260 = vld [vmem:[#allocation2 + $0x5d8] sm:$0xff]
    %v261 = vld [vmem:[#allocation2 + $0x5e0] sm:$0xff]
    %v262 = vld [vmem:[#allocation2 + $0x5e8] sm:$0xff]
    %v263 = vld [vmem:[#allocation2 + $0x5f0] sm:$0xff]
    %v264 = vld [vmem:[#allocation2 + $0x5f8] sm:$0xff]
    %v265 = vld [vmem:[#allocation2 + $0x600] sm:$0xff]
    %v266 = vld [vmem:[#allocation2 + $0x608] sm:$0xff]
    %v267 = vld [vmem:[#allocation2 + $0x610] sm:$0xff]
    %v268 = vld [vmem:[#allocation2 + $0x618] sm:$0xff]
    %v269 = vld [vmem:[#allocation2 + $0x620] sm:$0xff]
    %v270 = vld [vmem:[#allocation2 + $0x628] sm:$0xff]
    %v271 = vld [vmem:[#allocation2 + $0x630] sm:$0xff]
    %v272 = vld [vmem:[#allocation2 + $0x638] sm:$0xff]
    %v273 = vld [vmem:[#allocation2 + $0x640] sm:$0xff]
    %v274 = vld [vmem:[#allocation2 + $0x648] sm:$0xff]
    %v275 = vld [vmem:[#allocation2 + $0x650] sm:$0xff]
    %v276 = vld [vmem:[#allocation2 + $0x658] sm:$0xff]
    %v277 = vld [vmem:[#allocation2 + $0x660] sm:$0xff]
    %v278 = vld [vmem:[#allocation2 + $0x668] sm:$0xff]
    %v279 = vld [vmem:[#allocation2 + $0x670] sm:$0xff]
    %v280 = vld [vmem:[#allocation2 + $0x678] sm:$0xff]
    %v281 = vld [vmem:[#allocation2 + $0x680] sm:$0xff]
    %v282 = vld [vmem:[#allocation2 + $0x688] sm:$0xff]
    %v283 = vld [vmem:[#allocation2 + $0x690] sm:$0xff]
    %v284 = vld [vmem:[#allocation2 + $0x698] sm:$0xff]
    %v285 = vld [vmem:[#allocation2 + $0x6a0] sm:$0xff]
    %v286 = vld [vmem:[#allocation2 + $0x6a8] sm:$0xff]
    %v287 = vld [vmem:[#allocation2 + $0x6b0] sm:$0xff]
    %v288 = vld [vmem:[#allocation2 + $0x6b8] sm:$0xff]
    %v289 = vld [vmem:[#allocation2 + $0x6c0] sm:$0xff]
    %v290 = vld [vmem:[#allocation2 + $0x6c8] sm:$0xff]
    %v291 = vld [vmem:[#allocation2 + $0x6d0] sm:$0xff]
    %v292 = vld [vmem:[#allocation2 + $0x6d8] sm:$0xff]
    %v293 = vld [vmem:[#allocation2 + $0x6e0] sm:$0xff]
    %v294 = vld [vmem:[#allocation2 + $0x6e8] sm:$0xff]
    %v295 = vld [vmem:[#allocation2 + $0x6f0] sm:$0xff]
    %v296 = vld [vmem:[#allocation2 + $0x6f8] sm:$0xff]
    %v297 = vld [vmem:[%s2] sm:$0xf]
    %v299 = vperm.slane %v297, 0
    %v300 = vperm.slane %v297, 1
    %v301 = vperm.slane %v297, 2
    %v302 = vperm.slane %v297, 3
    %v531 = vunpack.c.l.b16 %v73
    %v532 = vunpack.c.h.b16 %v73
    %v533 = vunpack.c.l.b16 %v74
    %v534 = vunpack.c.h.b16 %v74
    %v535 = vunpack.c.l.b16 %v75
    %v536 = vunpack.c.h.b16 %v75
    %v537 = vunpack.c.l.b16 %v76
    %v538 = vunpack.c.h.b16 %v76
    %v539 = vunpack.c.l.b16 %v77
    %v540 = vunpack.c.h.b16 %v77
    %v541 = vunpack.c.l.b16 %v78
    %v542 = vunpack.c.h.b16 %v78
    %v543 = vunpack.c.l.b16 %v79
    %v544 = vunpack.c.h.b16 %v79
    %v545 = vunpack.c.l.b16 %v80
    %v546 = vunpack.c.h.b16 %v80
    %v547 = vunpack.c.l.b16 %v81
    %v548 = vunpack.c.h.b16 %v81
    %v549 = vunpack.c.l.b16 %v82
    %v550 = vunpack.c.h.b16 %v82
    %v551 = vunpack.c.l.b16 %v83
    %v552 = vunpack.c.h.b16 %v83
    %v553 = vunpack.c.l.b16 %v84
    %v554 = vunpack.c.h.b16 %v84
    %v555 = vunpack.c.l.b16 %v85
    %v556 = vunpack.c.h.b16 %v85
    %v557 = vunpack.c.l.b16 %v86
    %v558 = vunpack.c.h.b16 %v86
    %v559 = vunpack.c.l.b16 %v87
    %v560 = vunpack.c.h.b16 %v87
    %v561 = vunpack.c.l.b16 %v88
    %v562 = vunpack.c.h.b16 %v88
    %v563 = vunpack.c.l.b16 %v89
    %v564 = vunpack.c.h.b16 %v89
    %v565 = vunpack.c.l.b16 %v90
    %v566 = vunpack.c.h.b16 %v90
    %v567 = vunpack.c.l.b16 %v91
    %v568 = vunpack.c.h.b16 %v91
    %v569 = vunpack.c.l.b16 %v92
    %v570 = vunpack.c.h.b16 %v92
    %v571 = vunpack.c.l.b16 %v93
    %v572 = vunpack.c.h.b16 %v93
    %v573 = vunpack.c.l.b16 %v94
    %v574 = vunpack.c.h.b16 %v94
    %v575 = vunpack.c.l.b16 %v95
    %v576 = vunpack.c.h.b16 %v95
    %v577 = vunpack.c.l.b16 %v96
    %v578 = vunpack.c.h.b16 %v96
    %v579 = vunpack.c.l.b16 %v97
    %v580 = vunpack.c.h.b16 %v97
    %v581 = vunpack.c.l.b16 %v98
    %v582 = vunpack.c.h.b16 %v98
    %v583 = vunpack.c.l.b16 %v99
    %v584 = vunpack.c.h.b16 %v99
    %v585 = vunpack.c.l.b16 %v100
    %v586 = vunpack.c.h.b16 %v100
    %v587 = vunpack.c.l.b16 %v101
    %v588 = vunpack.c.h.b16 %v101
    %v589 = vunpack.c.l.b16 %v102
    %v590 = vunpack.c.h.b16 %v102
    %v591 = vunpack.c.l.b16 %v103
    %v592 = vunpack.c.h.b16 %v103
    %v593 = vunpack.c.l.b16 %v104
    %v594 = vunpack.c.h.b16 %v104
    %v595 = vunpack.c.l.b16 %v105
    %v596 = vunpack.c.h.b16 %v105
    %v597 = vunpack.c.l.b16 %v106
    %v598 = vunpack.c.h.b16 %v106
    %v599 = vunpack.c.l.b16 %v107
    %v600 = vunpack.c.h.b16 %v107
    %v601 = vunpack.c.l.b16 %v108
    %v602 = vunpack.c.h.b16 %v108
    %v603 = vunpack.c.l.b16 %v109
    %v604 = vunpack.c.h.b16 %v109
    %v605 = vunpack.c.l.b16 %v110
    %v606 = vunpack.c.h.b16 %v110
    %v607 = vunpack.c.l.b16 %v111
    %v608 = vunpack.c.h.b16 %v111
    %v609 = vunpack.c.l.b16 %v112
    %v610 = vunpack.c.h.b16 %v112
    %v611 = vunpack.c.l.b16 %v113
    %v612 = vunpack.c.h.b16 %v113
    %v613 = vunpack.c.l.b16 %v114
    %v614 = vunpack.c.h.b16 %v114
    %v615 = vunpack.c.l.b16 %v115
    %v616 = vunpack.c.h.b16 %v115
    %v617 = vunpack.c.l.b16 %v116
    %v618 = vunpack.c.h.b16 %v116
    %v619 = vunpack.c.l.b16 %v117
    %v620 = vunpack.c.h.b16 %v117
    %v621 = vunpack.c.l.b16 %v118
    %v622 = vunpack.c.h.b16 %v118
    %v623 = vunpack.c.l.b16 %v119
    %v624 = vunpack.c.h.b16 %v119
    %v625 = vunpack.c.l.b16 %v120
    %v626 = vunpack.c.h.b16 %v120
    %v627 = vunpack.c.l.b16 %v121
    %v628 = vunpack.c.h.b16 %v121
    %v629 = vunpack.c.l.b16 %v122
    %v630 = vunpack.c.h.b16 %v122
    %v631 = vunpack.c.l.b16 %v123
    %v632 = vunpack.c.h.b16 %v123
    %v633 = vunpack.c.l.b16 %v124
    %v634 = vunpack.c.h.b16 %v124
    %v635 = vunpack.c.l.b16 %v125
    %v636 = vunpack.c.h.b16 %v125
    %v637 = vunpack.c.l.b16 %v126
    %v638 = vunpack.c.h.b16 %v126
    %v639 = vunpack.c.l.b16 %v127
    %v640 = vunpack.c.h.b16 %v127
    %v641 = vunpack.c.l.b16 %v128
    %v642 = vunpack.c.h.b16 %v128
    %v643 = vunpack.c.l.b16 %v129
    %v644 = vunpack.c.h.b16 %v129
    %v645 = vunpack.c.l.b16 %v130
    %v646 = vunpack.c.h.b16 %v130
    %v647 = vunpack.c.l.b16 %v131
    %v648 = vunpack.c.h.b16 %v131
    %v649 = vunpack.c.l.b16 %v132
    %v650 = vunpack.c.h.b16 %v132
    %v651 = vunpack.c.l.b16 %v133
    %v652 = vunpack.c.h.b16 %v133
    %v653 = vunpack.c.l.b16 %v134
    %v654 = vunpack.c.h.b16 %v134
    %v655 = vunpack.c.l.b16 %v135
    %v656 = vunpack.c.h.b16 %v135
    %v657 = vunpack.c.l.b16 %v136
    %v658 = vunpack.c.h.b16 %v136
    %v659 = vunpack.c.l.b16 %v137
    %v660 = vunpack.c.h.b16 %v137
    %v661 = vunpack.c.l.b16 %v138
    %v662 = vunpack.c.h.b16 %v138
    %v663 = vunpack.c.l.b16 %v139
    %v664 = vunpack.c.h.b16 %v139
    %v665 = vunpack.c.l.b16 %v140
    %v666 = vunpack.c.h.b16 %v140
    %v667 = vunpack.c.l.b16 %v141
    %v668 = vunpack.c.h.b16 %v141
    %v669 = vunpack.c.l.b16 %v142
    %v670 = vunpack.c.h.b16 %v142
    %v671 = vunpack.c.l.b16 %v143
    %v672 = vunpack.c.h.b16 %v143
    %v673 = vunpack.c.l.b16 %v144
    %v674 = vunpack.c.h.b16 %v144
    %v675 = vunpack.c.l.b16 %v145
    %v676 = vunpack.c.h.b16 %v145
    %v677 = vunpack.c.l.b16 %v146
    %v678 = vunpack.c.h.b16 %v146
    %v679 = vunpack.c.l.b16 %v147
    %v680 = vunpack.c.h.b16 %v147
    %v681 = vunpack.c.l.b16 %v148
    %v682 = vunpack.c.h.b16 %v148
    %v683 = vunpack.c.l.b16 %v149
    %v684 = vunpack.c.h.b16 %v149
    %v685 = vunpack.c.l.b16 %v150
    %v686 = vunpack.c.h.b16 %v150
    %v687 = vunpack.c.l.b16 %v151
    %v688 = vunpack.c.h.b16 %v151
    %v689 = vunpack.c.l.b16 %v152
    %v690 = vunpack.c.h.b16 %v152
    %v691 = vunpack.c.l.b16 %v153
    %v692 = vunpack.c.h.b16 %v153
    %v693 = vunpack.c.l.b16 %v154
    %v694 = vunpack.c.h.b16 %v154
    %v695 = vunpack.c.l.b16 %v155
    %v696 = vunpack.c.h.b16 %v155
    %v697 = vunpack.c.l.b16 %v156
    %v698 = vunpack.c.h.b16 %v156
    %v699 = vunpack.c.l.b16 %v157
    %v700 = vunpack.c.h.b16 %v157
    %v701 = vunpack.c.l.b16 %v158
    %v702 = vunpack.c.h.b16 %v158
    %v703 = vunpack.c.l.b16 %v159
    %v704 = vunpack.c.h.b16 %v159
    %v705 = vunpack.c.l.b16 %v160
    %v706 = vunpack.c.h.b16 %v160
    %v707 = vunpack.c.l.b16 %v161
    %v708 = vunpack.c.h.b16 %v161
    %v709 = vunpack.c.l.b16 %v162
    %v710 = vunpack.c.h.b16 %v162
    %v711 = vunpack.c.l.b16 %v163
    %v712 = vunpack.c.h.b16 %v163
    %v713 = vunpack.c.l.b16 %v164
    %v714 = vunpack.c.h.b16 %v164
    %v715 = vunpack.c.l.b16 %v165
    %v716 = vunpack.c.h.b16 %v165
    %v717 = vunpack.c.l.b16 %v166
    %v718 = vunpack.c.h.b16 %v166
    %v719 = vunpack.c.l.b16 %v167
    %v720 = vunpack.c.h.b16 %v167
    %v721 = vunpack.c.l.b16 %v168
    %v722 = vunpack.c.h.b16 %v168
    %v723 = vunpack.c.l.b16 %v169
    %v724 = vunpack.c.h.b16 %v169
    %v725 = vunpack.c.l.b16 %v170
    %v726 = vunpack.c.h.b16 %v170
    %v727 = vunpack.c.l.b16 %v171
    %v728 = vunpack.c.h.b16 %v171
    %v729 = vunpack.c.l.b16 %v172
    %v730 = vunpack.c.h.b16 %v172
    %v731 = vunpack.c.l.b16 %v173
    %v732 = vunpack.c.h.b16 %v173
    %v733 = vunpack.c.l.b16 %v174
    %v734 = vunpack.c.h.b16 %v174
    %v735 = vunpack.c.l.b16 %v175
    %v736 = vunpack.c.h.b16 %v175
    %v737 = vunpack.c.l.b16 %v176
    %v738 = vunpack.c.h.b16 %v176
    %v739 = vunpack.c.l.b16 %v177
    %v740 = vunpack.c.h.b16 %v177
    %v741 = vunpack.c.l.b16 %v178
    %v742 = vunpack.c.h.b16 %v178
    %v743 = vunpack.c.l.b16 %v179
    %v744 = vunpack.c.h.b16 %v179
    %v745 = vunpack.c.l.b16 %v180
    %v746 = vunpack.c.h.b16 %v180
    %v747 = vunpack.c.l.b16 %v181
    %v748 = vunpack.c.h.b16 %v181
    %v749 = vunpack.c.l.b16 %v182
    %v750 = vunpack.c.h.b16 %v182
    %v751 = vunpack.c.l.b16 %v183
    %v752 = vunpack.c.h.b16 %v183
    %v753 = vunpack.c.l.b16 %v184
    %v754 = vunpack.c.h.b16 %v184
    %v755 = vunpack.c.l.b16 %v185
    %v756 = vunpack.c.h.b16 %v185
    %v757 = vunpack.c.l.b16 %v186
    %v758 = vunpack.c.h.b16 %v186
    %v759 = vunpack.c.l.b16 %v187
    %v760 = vunpack.c.h.b16 %v187
    %v761 = vunpack.c.l.b16 %v188
    %v762 = vunpack.c.h.b16 %v188
    %v763 = vunpack.c.l.b16 %v189
    %v764 = vunpack.c.h.b16 %v189
    %v765 = vunpack.c.l.b16 %v190
    %v766 = vunpack.c.h.b16 %v190
    %v767 = vunpack.c.l.b16 %v191
    %v768 = vunpack.c.h.b16 %v191
    %v769 = vunpack.c.l.b16 %v192
    %v770 = vunpack.c.h.b16 %v192
    %v771 = vunpack.c.l.b16 %v193
    %v772 = vunpack.c.h.b16 %v193
    %v773 = vunpack.c.l.b16 %v194
    %v774 = vunpack.c.h.b16 %v194
    %v775 = vunpack.c.l.b16 %v195
    %v776 = vunpack.c.h.b16 %v195
    %v777 = vunpack.c.l.b16 %v196
    %v778 = vunpack.c.h.b16 %v196
    %v779 = vunpack.c.l.b16 %v197
    %v780 = vunpack.c.h.b16 %v197
    %v781 = vunpack.c.l.b16 %v198
    %v782 = vunpack.c.h.b16 %v198
    %v783 = vunpack.c.l.b16 %v199
    %v784 = vunpack.c.h.b16 %v199
    %v785 = vunpack.c.l.b16 %v200
    %v786 = vunpack.c.h.b16 %v200
    %v787 = vunpack.c.l.b16 %v201
    %v788 = vunpack.c.h.b16 %v201
    %v789 = vunpack.c.l.b16 %v202
    %v790 = vunpack.c.h.b16 %v202
    %v791 = vunpack.c.l.b16 %v203
    %v792 = vunpack.c.h.b16 %v203
    %v793 = vunpack.c.l.b16 %v204
    %v794 = vunpack.c.h.b16 %v204
    %v795 = vunpack.c.l.b16 %v205
    %v796 = vunpack.c.h.b16 %v205
    %v797 = vunpack.c.l.b16 %v206
    %v798 = vunpack.c.h.b16 %v206
    %v799 = vunpack.c.l.b16 %v207
    %v800 = vunpack.c.h.b16 %v207
    %v801 = vunpack.c.l.b16 %v208
    %v802 = vunpack.c.h.b16 %v208
    %v803 = vunpack.c.l.b16 %v209
    %v804 = vunpack.c.h.b16 %v209
    %v805 = vunpack.c.l.b16 %v210
    %v806 = vunpack.c.h.b16 %v210
    %v807 = vunpack.c.l.b16 %v211
    %v808 = vunpack.c.h.b16 %v211
    %v809 = vunpack.c.l.b16 %v212
    %v810 = vunpack.c.h.b16 %v212
    %v811 = vunpack.c.l.b16 %v213
    %v812 = vunpack.c.h.b16 %v213
    %v813 = vunpack.c.l.b16 %v214
    %v814 = vunpack.c.h.b16 %v214
    %v815 = vunpack.c.l.b16 %v215
    %v816 = vunpack.c.h.b16 %v215
    %v817 = vunpack.c.l.b16 %v216
    %v818 = vunpack.c.h.b16 %v216
    %v819 = vunpack.c.l.b16 %v217
    %v820 = vunpack.c.h.b16 %v217
    %v821 = vunpack.c.l.b16 %v218
    %v822 = vunpack.c.h.b16 %v218
    %v823 = vunpack.c.l.b16 %v219
    %v824 = vunpack.c.h.b16 %v219
    %v825 = vunpack.c.l.b16 %v220
    %v826 = vunpack.c.h.b16 %v220
    %v827 = vunpack.c.l.b16 %v221
    %v828 = vunpack.c.h.b16 %v221
    %v829 = vunpack.c.l.b16 %v222
    %v830 = vunpack.c.h.b16 %v222
    %v831 = vunpack.c.l.b16 %v223
    %v832 = vunpack.c.h.b16 %v223
    %v833 = vunpack.c.l.b16 %v224
    %v834 = vunpack.c.h.b16 %v224
    %v835 = vunpack.c.l.b16 %v225
    %v836 = vunpack.c.h.b16 %v225
    %v837 = vunpack.c.l.b16 %v226
    %v838 = vunpack.c.h.b16 %v226
    %v839 = vunpack.c.l.b16 %v227
    %v840 = vunpack.c.h.b16 %v227
    %v841 = vunpack.c.l.b16 %v228
    %v842 = vunpack.c.h.b16 %v228
    %v843 = vunpack.c.l.b16 %v229
    %v844 = vunpack.c.h.b16 %v229
    %v845 = vunpack.c.l.b16 %v230
    %v846 = vunpack.c.h.b16 %v230
    %v847 = vunpack.c.l.b16 %v231
    %v848 = vunpack.c.h.b16 %v231
    %v849 = vunpack.c.l.b16 %v232
    %v850 = vunpack.c.h.b16 %v232
    %v851 = vunpack.c.l.b16 %v233
    %v852 = vunpack.c.h.b16 %v233
    %v853 = vunpack.c.l.b16 %v234
    %v854 = vunpack.c.h.b16 %v234
    %v855 = vunpack.c.l.b16 %v235
    %v856 = vunpack.c.h.b16 %v235
    %v857 = vunpack.c.l.b16 %v236
    %v858 = vunpack.c.h.b16 %v236
    %v859 = vunpack.c.l.b16 %v237
    %v860 = vunpack.c.h.b16 %v237
    %v861 = vunpack.c.l.b16 %v238
    %v862 = vunpack.c.h.b16 %v238
    %v863 = vunpack.c.l.b16 %v239
    %v864 = vunpack.c.h.b16 %v239
    %v865 = vunpack.c.l.b16 %v240
    %v866 = vunpack.c.h.b16 %v240
    %v867 = vunpack.c.l.b16 %v241
    %v868 = vunpack.c.h.b16 %v241
    %v869 = vunpack.c.l.b16 %v242
    %v870 = vunpack.c.h.b16 %v242
    %v871 = vunpack.c.l.b16 %v243
    %v872 = vunpack.c.h.b16 %v243
    %v873 = vunpack.c.l.b16 %v244
    %v874 = vunpack.c.h.b16 %v244
    %v875 = vunpack.c.l.b16 %v245
    %v876 = vunpack.c.h.b16 %v245
    %v877 = vunpack.c.l.b16 %v246
    %v878 = vunpack.c.h.b16 %v246
    %v879 = vunpack.c.l.b16 %v247
    %v880 = vunpack.c.h.b16 %v247
    %v881 = vunpack.c.l.b16 %v248
    %v882 = vunpack.c.h.b16 %v248
    %v883 = vunpack.c.l.b16 %v249
    %v884 = vunpack.c.h.b16 %v249
    %v885 = vunpack.c.l.b16 %v250
    %v886 = vunpack.c.h.b16 %v250
    %v887 = vunpack.c.l.b16 %v251
    %v888 = vunpack.c.h.b16 %v251
    %v889 = vunpack.c.l.b16 %v252
    %v890 = vunpack.c.h.b16 %v252
    %v891 = vunpack.c.l.b16 %v253
    %v892 = vunpack.c.h.b16 %v253
    %v893 = vunpack.c.l.b16 %v254
    %v894 = vunpack.c.h.b16 %v254
    %v895 = vunpack.c.l.b16 %v255
    %v896 = vunpack.c.h.b16 %v255
    %v897 = vunpack.c.l.b16 %v256
    %v898 = vunpack.c.h.b16 %v256
    %v899 = vunpack.c.l.b16 %v257
    %v900 = vunpack.c.h.b16 %v257
    %v901 = vunpack.c.l.b16 %v258
    %v902 = vunpack.c.h.b16 %v258
    %v903 = vunpack.c.l.b16 %v259
    %v904 = vunpack.c.h.b16 %v259
    %v905 = vunpack.c.l.b16 %v260
    %v906 = vunpack.c.h.b16 %v260
    %v907 = vunpack.c.l.b16 %v261
    %v908 = vunpack.c.h.b16 %v261
    %v909 = vunpack.c.l.b16 %v262
    %v910 = vunpack.c.h.b16 %v262
    %v911 = vunpack.c.l.b16 %v263
    %v912 = vunpack.c.h.b16 %v263
    %v913 = vunpack.c.l.b16 %v264
    %v914 = vunpack.c.h.b16 %v264
    %v915 = vunpack.c.l.b16 %v265
    %v916 = vunpack.c.h.b16 %v265
    %v917 = vunpack.c.l.b16 %v266
    %v918 = vunpack.c.h.b16 %v266
    %v919 = vunpack.c.l.b16 %v267
    %v920 = vunpack.c.h.b16 %v267
    %v921 = vunpack.c.l.b16 %v268
    %v922 = vunpack.c.h.b16 %v268
    %v923 = vunpack.c.l.b16 %v269
    %v924 = vunpack.c.h.b16 %v269
    %v925 = vunpack.c.l.b16 %v270
    %v926 = vunpack.c.h.b16 %v270
    %v927 = vunpack.c.l.b16 %v271
    %v928 = vunpack.c.h.b16 %v271
    %v929 = vunpack.c.l.b16 %v272
    %v930 = vunpack.c.h.b16 %v272
    %v931 = vunpack.c.l.b16 %v273
    %v932 = vunpack.c.h.b16 %v273
    %v933 = vunpack.c.l.b16 %v274
    %v934 = vunpack.c.h.b16 %v274
    %v935 = vunpack.c.l.b16 %v275
    %v936 = vunpack.c.h.b16 %v275
    %v937 = vunpack.c.l.b16 %v276
    %v938 = vunpack.c.h.b16 %v276
    %v939 = vunpack.c.l.b16 %v277
    %v940 = vunpack.c.h.b16 %v277
    %v941 = vunpack.c.l.b16 %v278
    %v942 = vunpack.c.h.b16 %v278
    %v943 = vunpack.c.l.b16 %v279
    %v944 = vunpack.c.h.b16 %v279
    %v945 = vunpack.c.l.b16 %v280
    %v946 = vunpack.c.h.b16 %v280
    %v947 = vunpack.c.l.b16 %v281
    %v948 = vunpack.c.h.b16 %v281
    %v949 = vunpack.c.l.b16 %v282
    %v950 = vunpack.c.h.b16 %v282
    %v951 = vunpack.c.l.b16 %v283
    %v952 = vunpack.c.h.b16 %v283
    %v953 = vunpack.c.l.b16 %v284
    %v954 = vunpack.c.h.b16 %v284
    %v955 = vunpack.c.l.b16 %v285
    %v956 = vunpack.c.h.b16 %v285
    %v957 = vunpack.c.l.b16 %v286
    %v958 = vunpack.c.h.b16 %v286
    %v959 = vunpack.c.l.b16 %v287
    %v960 = vunpack.c.h.b16 %v287
    %v961 = vunpack.c.l.b16 %v288
    %v962 = vunpack.c.h.b16 %v288
    %v963 = vunpack.c.l.b16 %v289
    %v964 = vunpack.c.h.b16 %v289
    %v965 = vunpack.c.l.b16 %v290
    %v966 = vunpack.c.h.b16 %v290
    %v967 = vunpack.c.l.b16 %v291
    %v968 = vunpack.c.h.b16 %v291
    %v969 = vunpack.c.l.b16 %v292
    %v970 = vunpack.c.h.b16 %v292
    %v971 = vunpack.c.l.b16 %v293
    %v972 = vunpack.c.h.b16 %v293
    %v973 = vunpack.c.l.b16 %v294
    %v974 = vunpack.c.h.b16 %v294
    %v975 = vunpack.c.l.b16 %v295
    %v976 = vunpack.c.h.b16 %v295
    %v977 = vunpack.c.l.b16 %v296
    %v978 = vunpack.c.h.b16 %v296
    %v979 = vpack.c.b16 %v535, %v531
    %v980 = vpack.c.b16 %v536, %v532
    %v981 = vpack.c.b16 %v537, %v533
    %v982 = vpack.c.b16 %v538, %v534
    %v983 = vpack.c.b16 %v543, %v539
    %v984 = vpack.c.b16 %v544, %v540
    %v985 = vpack.c.b16 %v545, %v541
    %v986 = vpack.c.b16 %v546, %v542
    %v987 = vpack.c.b16 %v551, %v547
    %v988 = vpack.c.b16 %v552, %v548
    %v989 = vpack.c.b16 %v553, %v549
    %v990 = vpack.c.b16 %v554, %v550
    %v991 = vpack.c.b16 %v559, %v555
    %v992 = vpack.c.b16 %v560, %v556
    %v993 = vpack.c.b16 %v561, %v557
    %v994 = vpack.c.b16 %v562, %v558
    %v995 = vpack.c.b16 %v567, %v563
    %v996 = vpack.c.b16 %v568, %v564
    %v997 = vpack.c.b16 %v569, %v565
    %v998 = vpack.c.b16 %v570, %v566
    %v999 = vpack.c.b16 %v575, %v571
    %v1000 = vpack.c.b16 %v576, %v572
    %v1001 = vpack.c.b16 %v577, %v573
    %v1002 = vpack.c.b16 %v578, %v574
    %v1003 = vpack.c.b16 %v583, %v579
    %v1004 = vpack.c.b16 %v584, %v580
    %v1005 = vpack.c.b16 %v585, %v581
    %v1006 = vpack.c.b16 %v586, %v582
    %v1007 = vpack.c.b16 %v591, %v587
    %v1008 = vpack.c.b16 %v592, %v588
    %v1009 = vpack.c.b16 %v593, %v589
    %v1010 = vpack.c.b16 %v594, %v590
    %v1011 = vpack.c.b16 %v599, %v595
    %v1012 = vpack.c.b16 %v600, %v596
    %v1013 = vpack.c.b16 %v601, %v597
    %v1014 = vpack.c.b16 %v602, %v598
    %v1015 = vpack.c.b16 %v607, %v603
    %v1016 = vpack.c.b16 %v608, %v604
    %v1017 = vpack.c.b16 %v609, %v605
    %v1018 = vpack.c.b16 %v610, %v606
    %v1019 = vpack.c.b16 %v615, %v611
    %v1020 = vpack.c.b16 %v616, %v612
    %v1021 = vpack.c.b16 %v617, %v613
    %v1022 = vpack.c.b16 %v618, %v614
    %v1023 = vpack.c.b16 %v623, %v619
    %v1024 = vpack.c.b16 %v624, %v620
    %v1025 = vpack.c.b16 %v625, %v621
    %v1026 = vpack.c.b16 %v626, %v622
    %v1027 = vpack.c.b16 %v631, %v627
    %v1028 = vpack.c.b16 %v632, %v628
    %v1029 = vpack.c.b16 %v633, %v629
    %v1030 = vpack.c.b16 %v634, %v630
    %v1031 = vpack.c.b16 %v639, %v635
    %v1032 = vpack.c.b16 %v640, %v636
    %v1033 = vpack.c.b16 %v641, %v637
    %v1034 = vpack.c.b16 %v642, %v638
    %v1035 = vpack.c.b16 %v647, %v643
    %v1036 = vpack.c.b16 %v648, %v644
    %v1037 = vpack.c.b16 %v649, %v645
    %v1038 = vpack.c.b16 %v650, %v646
    %v1039 = vpack.c.b16 %v655, %v651
    %v1040 = vpack.c.b16 %v656, %v652
    %v1041 = vpack.c.b16 %v657, %v653
    %v1042 = vpack.c.b16 %v658, %v654
    %v1043 = vpack.c.b16 %v663, %v659
    %v1044 = vpack.c.b16 %v664, %v660
    %v1045 = vpack.c.b16 %v665, %v661
    %v1046 = vpack.c.b16 %v666, %v662
    %v1047 = vpack.c.b16 %v671, %v667
    %v1048 = vpack.c.b16 %v672, %v668
    %v1049 = vpack.c.b16 %v673, %v669
    %v1050 = vpack.c.b16 %v674, %v670
    %v1051 = vpack.c.b16 %v679, %v675
    %v1052 = vpack.c.b16 %v680, %v676
    %v1053 = vpack.c.b16 %v681, %v677
    %v1054 = vpack.c.b16 %v682, %v678
    %v1055 = vpack.c.b16 %v687, %v683
    %v1056 = vpack.c.b16 %v688, %v684
    %v1057 = vpack.c.b16 %v689, %v685
    %v1058 = vpack.c.b16 %v690, %v686
    %v1059 = vpack.c.b16 %v695, %v691
    %v1060 = vpack.c.b16 %v696, %v692
    %v1061 = vpack.c.b16 %v697, %v693
    %v1062 = vpack.c.b16 %v698, %v694
    %v1063 = vpack.c.b16 %v703, %v699
    %v1064 = vpack.c.b16 %v704, %v700
    %v1065 = vpack.c.b16 %v705, %v701
    %v1066 = vpack.c.b16 %v706, %v702
    %v1067 = vpack.c.b16 %v711, %v707
    %v1068 = vpack.c.b16 %v712, %v708
    %v1069 = vpack.c.b16 %v713, %v709
    %v1070 = vpack.c.b16 %v714, %v710
    %v1071 = vpack.c.b16 %v719, %v715
    %v1072 = vpack.c.b16 %v720, %v716
    %v1073 = vpack.c.b16 %v721, %v717
    %v1074 = vpack.c.b16 %v722, %v718
    %v1075 = vpack.c.b16 %v727, %v723
    %v1076 = vpack.c.b16 %v728, %v724
    %v1077 = vpack.c.b16 %v729, %v725
    %v1078 = vpack.c.b16 %v730, %v726
    %v1079 = vpack.c.b16 %v735, %v731
    %v1080 = vpack.c.b16 %v736, %v732
    %v1081 = vpack.c.b16 %v737, %v733
    %v1082 = vpack.c.b16 %v738, %v734
    %v1083 = vpack.c.b16 %v743, %v739
    %v1084 = vpack.c.b16 %v744, %v740
    %v1085 = vpack.c.b16 %v745, %v741
    %v1086 = vpack.c.b16 %v746, %v742
    %v1087 = vpack.c.b16 %v751, %v747
    %v1088 = vpack.c.b16 %v752, %v748
    %v1089 = vpack.c.b16 %v753, %v749
    %v1090 = vpack.c.b16 %v754, %v750
    %v1091 = vpack.c.b16 %v759, %v755
    %v1092 = vpack.c.b16 %v760, %v756
    %v1093 = vpack.c.b16 %v761, %v757
    %v1094 = vpack.c.b16 %v762, %v758
    %v1095 = vpack.c.b16 %v767, %v763
    %v1096 = vpack.c.b16 %v768, %v764
    %v1097 = vpack.c.b16 %v769, %v765
    %v1098 = vpack.c.b16 %v770, %v766
    %v1099 = vpack.c.b16 %v775, %v771
    %v1100 = vpack.c.b16 %v776, %v772
    %v1101 = vpack.c.b16 %v777, %v773
    %v1102 = vpack.c.b16 %v778, %v774
    %v1103 = vpack.c.b16 %v783, %v779
    %v1104 = vpack.c.b16 %v784, %v780
    %v1105 = vpack.c.b16 %v785, %v781
    %v1106 = vpack.c.b16 %v786, %v782
    %v1107 = vpack.c.b16 %v791, %v787
    %v1108 = vpack.c.b16 %v792, %v788
    %v1109 = vpack.c.b16 %v793, %v789
    %v1110 = vpack.c.b16 %v794, %v790
    %v1111 = vpack.c.b16 %v799, %v795
    %v1112 = vpack.c.b16 %v800, %v796
    %v1113 = vpack.c.b16 %v801, %v797
    %v1114 = vpack.c.b16 %v802, %v798
    %v1115 = vpack.c.b16 %v807, %v803
    %v1116 = vpack.c.b16 %v808, %v804
    %v1117 = vpack.c.b16 %v809, %v805
    %v1118 = vpack.c.b16 %v810, %v806
    %v1119 = vpack.c.b16 %v815, %v811
    %v1120 = vpack.c.b16 %v816, %v812
    %v1121 = vpack.c.b16 %v817, %v813
    %v1122 = vpack.c.b16 %v818, %v814
    %v1123 = vpack.c.b16 %v823, %v819
    %v1124 = vpack.c.b16 %v824, %v820
    %v1125 = vpack.c.b16 %v825, %v821
    %v1126 = vpack.c.b16 %v826, %v822
    %v1127 = vpack.c.b16 %v831, %v827
    %v1128 = vpack.c.b16 %v832, %v828
    %v1129 = vpack.c.b16 %v833, %v829
    %v1130 = vpack.c.b16 %v834, %v830
    %v1131 = vpack.c.b16 %v839, %v835
    %v1132 = vpack.c.b16 %v840, %v836
    %v1133 = vpack.c.b16 %v841, %v837
    %v1134 = vpack.c.b16 %v842, %v838
    %v1135 = vpack.c.b16 %v847, %v843
    %v1136 = vpack.c.b16 %v848, %v844
    %v1137 = vpack.c.b16 %v849, %v845
    %v1138 = vpack.c.b16 %v850, %v846
    %v1139 = vpack.c.b16 %v855, %v851
    %v1140 = vpack.c.b16 %v856, %v852
    %v1141 = vpack.c.b16 %v857, %v853
    %v1142 = vpack.c.b16 %v858, %v854
    %v1143 = vpack.c.b16 %v863, %v859
    %v1144 = vpack.c.b16 %v864, %v860
    %v1145 = vpack.c.b16 %v865, %v861
    %v1146 = vpack.c.b16 %v866, %v862
    %v1147 = vpack.c.b16 %v871, %v867
    %v1148 = vpack.c.b16 %v872, %v868
    %v1149 = vpack.c.b16 %v873, %v869
    %v1150 = vpack.c.b16 %v874, %v870
    %v1151 = vpack.c.b16 %v879, %v875
    %v1152 = vpack.c.b16 %v880, %v876
    %v1153 = vpack.c.b16 %v881, %v877
    %v1154 = vpack.c.b16 %v882, %v878
    %v1155 = vpack.c.b16 %v887, %v883
    %v1156 = vpack.c.b16 %v888, %v884
    %v1157 = vpack.c.b16 %v889, %v885
    %v1158 = vpack.c.b16 %v890, %v886
    %v1159 = vpack.c.b16 %v895, %v891
    %v1160 = vpack.c.b16 %v896, %v892
    %v1161 = vpack.c.b16 %v897, %v893
    %v1162 = vpack.c.b16 %v898, %v894
    %v1163 = vpack.c.b16 %v903, %v899
    %v1164 = vpack.c.b16 %v904, %v900
    %v1165 = vpack.c.b16 %v905, %v901
    %v1166 = vpack.c.b16 %v906, %v902
    %v1167 = vpack.c.b16 %v911, %v907
    %v1168 = vpack.c.b16 %v912, %v908
    %v1169 = vpack.c.b16 %v913, %v909
    %v1170 = vpack.c.b16 %v914, %v910
    %v1171 = vpack.c.b16 %v919, %v915
    %v1172 = vpack.c.b16 %v920, %v916
    %v1173 = vpack.c.b16 %v921, %v917
    %v1174 = vpack.c.b16 %v922, %v918
    %v1175 = vpack.c.b16 %v927, %v923
    %v1176 = vpack.c.b16 %v928, %v924
    %v1177 = vpack.c.b16 %v929, %v925
    %v1178 = vpack.c.b16 %v930, %v926
    %v1179 = vpack.c.b16 %v935, %v931
    %v1180 = vpack.c.b16 %v936, %v932
    %v1181 = vpack.c.b16 %v937, %v933
    %v1182 = vpack.c.b16 %v938, %v934
    %v1183 = vpack.c.b16 %v943, %v939
    %v1184 = vpack.c.b16 %v944, %v940
    %v1185 = vpack.c.b16 %v945, %v941
    %v1186 = vpack.c.b16 %v946, %v942
    %v1187 = vpack.c.b16 %v951, %v947
    %v1188 = vpack.c.b16 %v952, %v948
    %v1189 = vpack.c.b16 %v953, %v949
    %v1190 = vpack.c.b16 %v954, %v950
    %v1191 = vpack.c.b16 %v959, %v955
    %v1192 = vpack.c.b16 %v960, %v956
    %v1193 = vpack.c.b16 %v961, %v957
    %v1194 = vpack.c.b16 %v962, %v958
    %v1195 = vpack.c.b16 %v967, %v963
    %v1196 = vpack.c.b16 %v968, %v964
    %v1197 = vpack.c.b16 %v969, %v965
    %v1198 = vpack.c.b16 %v970, %v966
    %v1199 = vpack.c.b16 %v975, %v971
    %v1200 = vpack.c.b16 %v976, %v972
    %v1201 = vpack.c.b16 %v977, %v973
    %v1202 = vpack.c.b16 %v978, %v974
    %1427 = vmatpush.bf16.msra.mxu0 %v1007
    %1428 = vmatpush.bf16.msra.mxu0 %v1003
    %1429 = vmatpush.bf16.msra.mxu0 %v999
    %1430 = vmatpush.bf16.msra.mxu0 %v995
    %1431 = vmatpush.bf16.msra.mxu0 %v991
    %1432 = vmatpush.bf16.msra.mxu0 %v987
    %1433 = vmatpush.bf16.msra.mxu0 %v983
    %1434 = vmatpush.bf16.msra.mxu0 %v979
    %1435 = vmatmul.bf16.gmra.mxu0 %v66
    %v1436 = vpop.f32.mrf.mxu0
    %v1437 = vadd.f32 %v299, %v1436
    %v1438 = vpop.f32.mrf.mxu0
    %1439 = vdwg.mxu0
    %1440 = vmatpush.bf16.msra.mxu0 %v1039
    %1441 = vmatpush.bf16.msra.mxu0 %v1035
    %1442 = vmatpush.bf16.msra.mxu0 %v1031
    %1443 = vmatpush.bf16.msra.mxu0 %v1027
    %1444 = vmatpush.bf16.msra.mxu0 %v1023
    %1445 = vmatpush.bf16.msra.mxu0 %v1019
    %1446 = vmatpush.bf16.msra.mxu0 %v1015
    %1447 = vmatpush.bf16.msra.mxu0 %v1011
    %1448 = vmatmul.bf16.gmra.mxu0 %v67
    %v1449 = vpop.f32.mrf.mxu0
    %v1450 = vadd.f32 %v1437, %v1449
    %v1451 = vpop.f32.mrf.mxu0
    %1452 = vdwg.mxu0
    %1453 = vmatpush.bf16.msra.mxu0 %v1071
    %1454 = vmatpush.bf16.msra.mxu0 %v1067
    %1455 = vmatpush.bf16.msra.mxu0 %v1063
    %1456 = vmatpush.bf16.msra.mxu0 %v1059
    %1457 = vmatpush.bf16.msra.mxu0 %v1055
    %1458 = vmatpush.bf16.msra.mxu0 %v1051
    %1459 = vmatpush.bf16.msra.mxu0 %v1047
    %1460 = vmatpush.bf16.msra.mxu0 %v1043
    %1461 = vmatmul.bf16.gmra.mxu0 %v68
    %v1462 = vpop.f32.mrf.mxu0
    %v1463 = vadd.f32 %v1450, %v1462
    %v1464 = vpop.f32.mrf.mxu0
    %1465 = vdwg.mxu0
    %1466 = vmatpush.bf16.msra.mxu0 %v1103
    %1467 = vmatpush.bf16.msra.mxu0 %v1099
    %1468 = vmatpush.bf16.msra.mxu0 %v1095
    %1469 = vmatpush.bf16.msra.mxu0 %v1091
    %1470 = vmatpush.bf16.msra.mxu0 %v1087
    %1471 = vmatpush.bf16.msra.mxu0 %v1083
    %1472 = vmatpush.bf16.msra.mxu0 %v1079
    %1473 = vmatpush.bf16.msra.mxu0 %v1075
    %1474 = vmatmul.bf16.gmra.mxu0 %v69
    %v1475 = vpop.f32.mrf.mxu0
    %v1476 = vadd.f32 %v1463, %v1475
    %v1477 = vpop.f32.mrf.mxu0
    %1478 = vdwg.mxu0
    %1479 = vmatpush.bf16.msra.mxu0 %v1135
    %1480 = vmatpush.bf16.msra.mxu0 %v1131
    %1481 = vmatpush.bf16.msra.mxu0 %v1127
    %1482 = vmatpush.bf16.msra.mxu0 %v1123
    %1483 = vmatpush.bf16.msra.mxu0 %v1119
    %1484 = vmatpush.bf16.msra.mxu0 %v1115
    %1485 = vmatpush.bf16.msra.mxu0 %v1111
    %1486 = vmatpush.bf16.msra.mxu0 %v1107
    %1487 = vmatmul.bf16.gmra.mxu0 %v70
    %v1488 = vpop.f32.mrf.mxu0
    %v1489 = vadd.f32 %v1476, %v1488
    %v1490 = vpop.f32.mrf.mxu0
    %1491 = vdwg.mxu0
    %1492 = vmatpush.bf16.msra.mxu0 %v1167
    %1493 = vmatpush.bf16.msra.mxu0 %v1163
    %1494 = vmatpush.bf16.msra.mxu0 %v1159
    %1495 = vmatpush.bf16.msra.mxu0 %v1155
    %1496 = vmatpush.bf16.msra.mxu0 %v1151
    %1497 = vmatpush.bf16.msra.mxu0 %v1147
    %1498 = vmatpush.bf16.msra.mxu0 %v1143
    %1499 = vmatpush.bf16.msra.mxu0 %v1139
    %1500 = vmatmul.bf16.gmra.mxu0 %v71
    %v1501 = vpop.f32.mrf.mxu0
    %v1502 = vadd.f32 %v1489, %v1501
    %v1503 = vpop.f32.mrf.mxu0
    %1504 = vdwg.mxu0
    %1505 = vmatpush.bf16.msra.mxu0 %v1199
    %1506 = vmatpush.bf16.msra.mxu0 %v1195
    %1507 = vmatpush.bf16.msra.mxu0 %v1191
    %1508 = vmatpush.bf16.msra.mxu0 %v1187
    %1509 = vmatpush.bf16.msra.mxu0 %v1183
    %1510 = vmatpush.bf16.msra.mxu0 %v1179
    %1511 = vmatpush.bf16.msra.mxu0 %v1175
    %1512 = vmatpush.bf16.msra.mxu0 %v1171
    %1513 = vmatmul.bf16.gmra.mxu0 %v72
    %v1514 = vpop.f32.mrf.mxu0
    %v1515 = vadd.f32 %v1502, %v1514
    %v1516 = vpop.f32.mrf.mxu0
    %1517 = vdwg.mxu0
    %1518 = vmatpush.bf16.msra.mxu0 %v1008
    %1519 = vmatpush.bf16.msra.mxu0 %v1004
    %1520 = vmatpush.bf16.msra.mxu0 %v1000
    %1521 = vmatpush.bf16.msra.mxu0 %v996
    %1522 = vmatpush.bf16.msra.mxu0 %v992
    %1523 = vmatpush.bf16.msra.mxu0 %v988
    %1524 = vmatpush.bf16.msra.mxu0 %v984
    %1525 = vmatpush.bf16.msra.mxu0 %v980
    %1526 = vmatmul.bf16.gmra.mxu0 %v66
    %v1527 = vpop.f32.mrf.mxu0
    %v1528 = vadd.f32 %v300, %v1527
    %v1529 = vpop.f32.mrf.mxu0
    %1530 = vdwg.mxu0
    %1531 = vmatpush.bf16.msra.mxu0 %v1040
    %1532 = vmatpush.bf16.msra.mxu0 %v1036
    %1533 = vmatpush.bf16.msra.mxu0 %v1032
    %1534 = vmatpush.bf16.msra.mxu0 %v1028
    %1535 = vmatpush.bf16.msra.mxu0 %v1024
    %1536 = vmatpush.bf16.msra.mxu0 %v1020
    %1537 = vmatpush.bf16.msra.mxu0 %v1016
    %1538 = vmatpush.bf16.msra.mxu0 %v1012
    %1539 = vmatmul.bf16.gmra.mxu0 %v67
    %v1540 = vpop.f32.mrf.mxu0
    %v1541 = vadd.f32 %v1528, %v1540
    %v1542 = vpop.f32.mrf.mxu0
    %1543 = vdwg.mxu0
    %1544 = vmatpush.bf16.msra.mxu0 %v1072
    %1545 = vmatpush.bf16.msra.mxu0 %v1068
    %1546 = vmatpush.bf16.msra.mxu0 %v1064
    %1547 = vmatpush.bf16.msra.mxu0 %v1060
    %1548 = vmatpush.bf16.msra.mxu0 %v1056
    %1549 = vmatpush.bf16.msra.mxu0 %v1052
    %1550 = vmatpush.bf16.msra.mxu0 %v1048
    %1551 = vmatpush.bf16.msra.mxu0 %v1044
    %1552 = vmatmul.bf16.gmra.mxu0 %v68
    %v1553 = vpop.f32.mrf.mxu0
    %v1554 = vadd.f32 %v1541, %v1553
    %v1555 = vpop.f32.mrf.mxu0
    %1556 = vdwg.mxu0
    %1557 = vmatpush.bf16.msra.mxu0 %v1104
    %1558 = vmatpush.bf16.msra.mxu0 %v1100
    %1559 = vmatpush.bf16.msra.mxu0 %v1096
    %1560 = vmatpush.bf16.msra.mxu0 %v1092
    %1561 = vmatpush.bf16.msra.mxu0 %v1088
    %1562 = vmatpush.bf16.msra.mxu0 %v1084
    %1563 = vmatpush.bf16.msra.mxu0 %v1080
    %1564 = vmatpush.bf16.msra.mxu0 %v1076
    %1565 = vmatmul.bf16.gmra.mxu0 %v69
    %v1566 = vpop.f32.mrf.mxu0
    %v1567 = vadd.f32 %v1554, %v1566
    %v1568 = vpop.f32.mrf.mxu0
    %1569 = vdwg.mxu0
    %1570 = vmatpush.bf16.msra.mxu0 %v1136
    %1571 = vmatpush.bf16.msra.mxu0 %v1132
    %1572 = vmatpush.bf16.msra.mxu0 %v1128
    %1573 = vmatpush.bf16.msra.mxu0 %v1124
    %1574 = vmatpush.bf16.msra.mxu0 %v1120
    %1575 = vmatpush.bf16.msra.mxu0 %v1116
    %1576 = vmatpush.bf16.msra.mxu0 %v1112
    %1577 = vmatpush.bf16.msra.mxu0 %v1108
    %1578 = vmatmul.bf16.gmra.mxu0 %v70
    %v1579 = vpop.f32.mrf.mxu0
    %v1580 = vadd.f32 %v1567, %v1579
    %v1581 = vpop.f32.mrf.mxu0
    %1582 = vdwg.mxu0
    %1583 = vmatpush.bf16.msra.mxu0 %v1168
    %1584 = vmatpush.bf16.msra.mxu0 %v1164
    %1585 = vmatpush.bf16.msra.mxu0 %v1160
    %1586 = vmatpush.bf16.msra.mxu0 %v1156
    %1587 = vmatpush.bf16.msra.mxu0 %v1152
    %1588 = vmatpush.bf16.msra.mxu0 %v1148
    %1589 = vmatpush.bf16.msra.mxu0 %v1144
    %1590 = vmatpush.bf16.msra.mxu0 %v1140
    %1591 = vmatmul.bf16.gmra.mxu0 %v71
    %v1592 = vpop.f32.mrf.mxu0
    %v1593 = vadd.f32 %v1580, %v1592
    %v1594 = vpop.f32.mrf.mxu0
    %1595 = vdwg.mxu0
    %1596 = vmatpush.bf16.msra.mxu0 %v1200
    %1597 = vmatpush.bf16.msra.mxu0 %v1196
    %1598 = vmatpush.bf16.msra.mxu0 %v1192
    %1599 = vmatpush.bf16.msra.mxu0 %v1188
    %1600 = vmatpush.bf16.msra.mxu0 %v1184
    %1601 = vmatpush.bf16.msra.mxu0 %v1180
    %1602 = vmatpush.bf16.msra.mxu0 %v1176
    %1603 = vmatpush.bf16.msra.mxu0 %v1172
    %1604 = vmatmul.bf16.gmra.mxu0 %v72
    %v1605 = vpop.f32.mrf.mxu0
    %v1606 = vadd.f32 %v1593, %v1605
    %v1607 = vpop.f32.mrf.mxu0
    %1608 = vdwg.mxu0
    %1609 = vmatpush.bf16.msra.mxu0 %v1009
    %1610 = vmatpush.bf16.msra.mxu0 %v1005
    %1611 = vmatpush.bf16.msra.mxu0 %v1001
    %1612 = vmatpush.bf16.msra.mxu0 %v997
    %1613 = vmatpush.bf16.msra.mxu0 %v993
    %1614 = vmatpush.bf16.msra.mxu0 %v989
    %1615 = vmatpush.bf16.msra.mxu0 %v985
    %1616 = vmatpush.bf16.msra.mxu0 %v981
    %1617 = vmatmul.bf16.gmra.mxu0 %v66
    %v1618 = vpop.f32.mrf.mxu0
    %v1619 = vadd.f32 %v301, %v1618
    %v1620 = vpop.f32.mrf.mxu0
    %1621 = vdwg.mxu0
    %1622 = vmatpush.bf16.msra.mxu0 %v1041
    %1623 = vmatpush.bf16.msra.mxu0 %v1037
    %1624 = vmatpush.bf16.msra.mxu0 %v1033
    %1625 = vmatpush.bf16.msra.mxu0 %v1029
    %1626 = vmatpush.bf16.msra.mxu0 %v1025
    %1627 = vmatpush.bf16.msra.mxu0 %v1021
    %1628 = vmatpush.bf16.msra.mxu0 %v1017
    %1629 = vmatpush.bf16.msra.mxu0 %v1013
    %1630 = vmatmul.bf16.gmra.mxu0 %v67
    %v1631 = vpop.f32.mrf.mxu0
    %v1632 = vadd.f32 %v1619, %v1631
    %v1633 = vpop.f32.mrf.mxu0
    %1634 = vdwg.mxu0
    %1635 = vmatpush.bf16.msra.mxu0 %v1073
    %1636 = vmatpush.bf16.msra.mxu0 %v1069
    %1637 = vmatpush.bf16.msra.mxu0 %v1065
    %1638 = vmatpush.bf16.msra.mxu0 %v1061
    %1639 = vmatpush.bf16.msra.mxu0 %v1057
    %1640 = vmatpush.bf16.msra.mxu0 %v1053
    %1641 = vmatpush.bf16.msra.mxu0 %v1049
    %1642 = vmatpush.bf16.msra.mxu0 %v1045
    %1643 = vmatmul.bf16.gmra.mxu0 %v68
    %v1644 = vpop.f32.mrf.mxu0
    %v1645 = vadd.f32 %v1632, %v1644
    %v1646 = vpop.f32.mrf.mxu0
    %1647 = vdwg.mxu0
    %1648 = vmatpush.bf16.msra.mxu0 %v1105
    %1649 = vmatpush.bf16.msra.mxu0 %v1101
    %1650 = vmatpush.bf16.msra.mxu0 %v1097
    %1651 = vmatpush.bf16.msra.mxu0 %v1093
    %1652 = vmatpush.bf16.msra.mxu0 %v1089
    %1653 = vmatpush.bf16.msra.mxu0 %v1085
    %1654 = vmatpush.bf16.msra.mxu0 %v1081
    %1655 = vmatpush.bf16.msra.mxu0 %v1077
    %1656 = vmatmul.bf16.gmra.mxu0 %v69
    %v1657 = vpop.f32.mrf.mxu0
    %v1658 = vadd.f32 %v1645, %v1657
    %v1659 = vpop.f32.mrf.mxu0
    %1660 = vdwg.mxu0
    %1661 = vmatpush.bf16.msra.mxu0 %v1137
    %1662 = vmatpush.bf16.msra.mxu0 %v1133
    %1663 = vmatpush.bf16.msra.mxu0 %v1129
    %1664 = vmatpush.bf16.msra.mxu0 %v1125
    %1665 = vmatpush.bf16.msra.mxu0 %v1121
    %1666 = vmatpush.bf16.msra.mxu0 %v1117
    %1667 = vmatpush.bf16.msra.mxu0 %v1113
    %1668 = vmatpush.bf16.msra.mxu0 %v1109
    %1669 = vmatmul.bf16.gmra.mxu0 %v70
    %v1670 = vpop.f32.mrf.mxu0
    %v1671 = vadd.f32 %v1658, %v1670
    %v1672 = vpop.f32.mrf.mxu0
    %1673 = vdwg.mxu0
    %1674 = vmatpush.bf16.msra.mxu0 %v1169
    %1675 = vmatpush.bf16.msra.mxu0 %v1165
    %1676 = vmatpush.bf16.msra.mxu0 %v1161
    %1677 = vmatpush.bf16.msra.mxu0 %v1157
    %1678 = vmatpush.bf16.msra.mxu0 %v1153
    %1679 = vmatpush.bf16.msra.mxu0 %v1149
    %1680 = vmatpush.bf16.msra.mxu0 %v1145
    %1681 = vmatpush.bf16.msra.mxu0 %v1141
    %1682 = vmatmul.bf16.gmra.mxu0 %v71
    %v1683 = vpop.f32.mrf.mxu0
    %v1684 = vadd.f32 %v1671, %v1683
    %v1685 = vpop.f32.mrf.mxu0
    %1686 = vdwg.mxu0
    %1687 = vmatpush.bf16.msra.mxu0 %v1201
    %1688 = vmatpush.bf16.msra.mxu0 %v1197
    %1689 = vmatpush.bf16.msra.mxu0 %v1193
    %1690 = vmatpush.bf16.msra.mxu0 %v1189
    %1691 = vmatpush.bf16.msra.mxu0 %v1185
    %1692 = vmatpush.bf16.msra.mxu0 %v1181
    %1693 = vmatpush.bf16.msra.mxu0 %v1177
    %1694 = vmatpush.bf16.msra.mxu0 %v1173
    %1695 = vmatmul.bf16.gmra.mxu0 %v72
    %v1696 = vpop.f32.mrf.mxu0
    %v1697 = vadd.f32 %v1684, %v1696
    %v1698 = vpop.f32.mrf.mxu0
    %1699 = vdwg.mxu0
    %1700 = vmatpush.bf16.msra.mxu0 %v1010
    %1701 = vmatpush.bf16.msra.mxu0 %v1006
    %1702 = vmatpush.bf16.msra.mxu0 %v1002
    %1703 = vmatpush.bf16.msra.mxu0 %v998
    %1704 = vmatpush.bf16.msra.mxu0 %v994
    %1705 = vmatpush.bf16.msra.mxu0 %v990
    %1706 = vmatpush.bf16.msra.mxu0 %v986
    %1707 = vmatpush.bf16.msra.mxu0 %v982
    %1708 = vmatmul.bf16.gmra.mxu0 %v66
    %v1709 = vpop.f32.mrf.mxu0
    %v1710 = vadd.f32 %v302, %v1709
    %v1711 = vpop.f32.mrf.mxu0
    %1712 = vdwg.mxu0
    %1713 = vmatpush.bf16.msra.mxu0 %v1042
    %1714 = vmatpush.bf16.msra.mxu0 %v1038
    %1715 = vmatpush.bf16.msra.mxu0 %v1034
    %1716 = vmatpush.bf16.msra.mxu0 %v1030
    %1717 = vmatpush.bf16.msra.mxu0 %v1026
    %1718 = vmatpush.bf16.msra.mxu0 %v1022
    %1719 = vmatpush.bf16.msra.mxu0 %v1018
    %1720 = vmatpush.bf16.msra.mxu0 %v1014
    %1721 = vmatmul.bf16.gmra.mxu0 %v67
    %v1722 = vpop.f32.mrf.mxu0
    %v1723 = vadd.f32 %v1710, %v1722
    %v1724 = vpop.f32.mrf.mxu0
    %1725 = vdwg.mxu0
    %1726 = vmatpush.bf16.msra.mxu0 %v1074
    %1727 = vmatpush.bf16.msra.mxu0 %v1070
    %1728 = vmatpush.bf16.msra.mxu0 %v1066
    %1729 = vmatpush.bf16.msra.mxu0 %v1062
    %1730 = vmatpush.bf16.msra.mxu0 %v1058
    %1731 = vmatpush.bf16.msra.mxu0 %v1054
    %1732 = vmatpush.bf16.msra.mxu0 %v1050
    %1733 = vmatpush.bf16.msra.mxu0 %v1046
    %1734 = vmatmul.bf16.gmra.mxu0 %v68
    %v1735 = vpop.f32.mrf.mxu0
    %v1736 = vadd.f32 %v1723, %v1735
    %v1737 = vpop.f32.mrf.mxu0
    %1738 = vdwg.mxu0
    %1739 = vmatpush.bf16.msra.mxu0 %v1106
    %1740 = vmatpush.bf16.msra.mxu0 %v1102
    %1741 = vmatpush.bf16.msra.mxu0 %v1098
    %1742 = vmatpush.bf16.msra.mxu0 %v1094
    %1743 = vmatpush.bf16.msra.mxu0 %v1090
    %1744 = vmatpush.bf16.msra.mxu0 %v1086
    %1745 = vmatpush.bf16.msra.mxu0 %v1082
    %1746 = vmatpush.bf16.msra.mxu0 %v1078
    %1747 = vmatmul.bf16.gmra.mxu0 %v69
    %v1748 = vpop.f32.mrf.mxu0
    %v1749 = vadd.f32 %v1736, %v1748
    %v1750 = vpop.f32.mrf.mxu0
    %1751 = vdwg.mxu0
    %1752 = vmatpush.bf16.msra.mxu0 %v1138
    %1753 = vmatpush.bf16.msra.mxu0 %v1134
    %1754 = vmatpush.bf16.msra.mxu0 %v1130
    %1755 = vmatpush.bf16.msra.mxu0 %v1126
    %1756 = vmatpush.bf16.msra.mxu0 %v1122
    %1757 = vmatpush.bf16.msra.mxu0 %v1118
    %1758 = vmatpush.bf16.msra.mxu0 %v1114
    %1759 = vmatpush.bf16.msra.mxu0 %v1110
    %1760 = vmatmul.bf16.gmra.mxu0 %v70
    %v1761 = vpop.f32.mrf.mxu0
    %v1762 = vadd.f32 %v1749, %v1761
    %v1763 = vpop.f32.mrf.mxu0
    %1764 = vdwg.mxu0
    %1765 = vmatpush.bf16.msra.mxu0 %v1170
    %1766 = vmatpush.bf16.msra.mxu0 %v1166
    %1767 = vmatpush.bf16.msra.mxu0 %v1162
    %1768 = vmatpush.bf16.msra.mxu0 %v1158
    %1769 = vmatpush.bf16.msra.mxu0 %v1154
    %1770 = vmatpush.bf16.msra.mxu0 %v1150
    %1771 = vmatpush.bf16.msra.mxu0 %v1146
    %1772 = vmatpush.bf16.msra.mxu0 %v1142
    %1773 = vmatmul.bf16.gmra.mxu0 %v71
    %v1774 = vpop.f32.mrf.mxu0
    %v1775 = vadd.f32 %v1762, %v1774
    %v1776 = vpop.f32.mrf.mxu0
    %1777 = vdwg.mxu0
    %1778 = vmatpush.bf16.msra.mxu0 %v1202
    %1779 = vmatpush.bf16.msra.mxu0 %v1198
    %1780 = vmatpush.bf16.msra.mxu0 %v1194
    %1781 = vmatpush.bf16.msra.mxu0 %v1190
    %1782 = vmatpush.bf16.msra.mxu0 %v1186
    %1783 = vmatpush.bf16.msra.mxu0 %v1182
    %1784 = vmatpush.bf16.msra.mxu0 %v1178
    %1785 = vmatpush.bf16.msra.mxu0 %v1174
    %1786 = vmatmul.bf16.gmra.mxu0 %v72
    %v1787 = vpop.f32.mrf.mxu0
    %v1788 = vadd.f32 %v1775, %v1787
    %v1789 = vpop.f32.mrf.mxu0
    %1790 = vdwg.mxu0
    %v1791 = vmax.f32 %v1515, 0.0
    %v1792 = vmax.f32 %v1606, 0.0
    %v1793 = vmax.f32 %v1697, 0.0
    %v1794 = vmax.f32 %v1788, 0.0
    %v1795 = vpack.c.bf16 %v1791, %v1791
    %v1796 = vpack.c.bf16 %v1792, %v1792
    %v1797 = vpack.c.bf16 %v1793, %v1793
    %v1798 = vpack.c.bf16 %v1794, %v1794
    %v1799 = vld [vmem:[#allocation5] sm:$0xff]
    %v1800 = vld [vmem:[#allocation5 + $0x8] sm:$0xff]
    %v1801 = vld [vmem:[#allocation5 + $0x10] sm:$0xff]
    %v1802 = vld [vmem:[#allocation5 + $0x18] sm:$0xff]
    %v1803 = vld [vmem:[#allocation5 + $0x20] sm:$0xff]
    %v1804 = vld [vmem:[#allocation5 + $0x28] sm:$0xff]
    %v1805 = vld [vmem:[#allocation5 + $0x30] sm:$0xff]
    %v1806 = vld [vmem:[#allocation5 + $0x38] sm:$0xff]
    %v1807 = vld [vmem:[#allocation5 + $0x40] sm:$0xff]
    %v1808 = vld [vmem:[#allocation5 + $0x48] sm:$0xff]
    %v1809 = vld [vmem:[#allocation5 + $0x50] sm:$0xff]
    %v1810 = vld [vmem:[#allocation5 + $0x58] sm:$0xff]
    %v1811 = vld [vmem:[#allocation5 + $0x60] sm:$0xff]
    %v1812 = vld [vmem:[#allocation5 + $0x68] sm:$0xff]
    %v1813 = vld [vmem:[#allocation5 + $0x70] sm:$0xff]
    %v1814 = vld [vmem:[#allocation5 + $0x78] sm:$0xff]
    %v1815 = vld [vmem:[#allocation5 + $0x80] sm:$0xff]
    %v1816 = vld [vmem:[#allocation5 + $0x88] sm:$0xff]
    %v1817 = vld [vmem:[#allocation5 + $0x90] sm:$0xff]
    %v1818 = vld [vmem:[#allocation5 + $0x98] sm:$0xff]
    %v1819 = vld [vmem:[#allocation5 + $0xa0] sm:$0xff]
    %v1820 = vld [vmem:[#allocation5 + $0xa8] sm:$0xff]
    %v1821 = vld [vmem:[#allocation5 + $0xb0] sm:$0xff]
    %v1822 = vld [vmem:[#allocation5 + $0xb8] sm:$0xff]
    %v1823 = vld [vmem:[#allocation5 + $0xc0] sm:$0xff]
    %v1824 = vld [vmem:[#allocation5 + $0xc8] sm:$0xff]
    %v1825 = vld [vmem:[#allocation5 + $0xd0] sm:$0xff]
    %v1826 = vld [vmem:[#allocation5 + $0xd8] sm:$0xff]
    %v1827 = vld [vmem:[#allocation5 + $0xe0] sm:$0xff]
    %v1828 = vld [vmem:[#allocation5 + $0xe8] sm:$0xff]
    %v1829 = vld [vmem:[#allocation5 + $0xf0] sm:$0xff]
    %v1830 = vld [vmem:[#allocation5 + $0xf8] sm:$0xff]
    %v1831 = vld [vmem:[#allocation5 + $0x100] sm:$0xff]
    %v1832 = vld [vmem:[#allocation5 + $0x108] sm:$0xff]
    %v1833 = vld [vmem:[#allocation5 + $0x110] sm:$0xff]
    %v1834 = vld [vmem:[#allocation5 + $0x118] sm:$0xff]
    %v1835 = vld [vmem:[#allocation5 + $0x120] sm:$0xff]
    %v1836 = vld [vmem:[#allocation5 + $0x128] sm:$0xff]
    %v1837 = vld [vmem:[#allocation5 + $0x130] sm:$0xff]
    %v1838 = vld [vmem:[#allocation5 + $0x138] sm:$0xff]
    %v1839 = vld [vmem:[#allocation5 + $0x140] sm:$0xff]
    %v1840 = vld [vmem:[#allocation5 + $0x148] sm:$0xff]
    %v1841 = vld [vmem:[#allocation5 + $0x150] sm:$0xff]
    %v1842 = vld [vmem:[#allocation5 + $0x158] sm:$0xff]
    %v1843 = vld [vmem:[#allocation5 + $0x160] sm:$0xff]
    %v1844 = vld [vmem:[#allocation5 + $0x168] sm:$0xff]
    %v1845 = vld [vmem:[#allocation5 + $0x170] sm:$0xff]
    %v1846 = vld [vmem:[#allocation5 + $0x178] sm:$0xff]
    %v1847 = vld [vmem:[#allocation5 + $0x180] sm:$0xff]
    %v1848 = vld [vmem:[#allocation5 + $0x188] sm:$0xff]
    %v1849 = vld [vmem:[#allocation5 + $0x190] sm:$0xff]
    %v1850 = vld [vmem:[#allocation5 + $0x198] sm:$0xff]
    %v1851 = vld [vmem:[#allocation5 + $0x1a0] sm:$0xff]
    %v1852 = vld [vmem:[#allocation5 + $0x1a8] sm:$0xff]
    %v1853 = vld [vmem:[#allocation5 + $0x1b0] sm:$0xff]
    %v1854 = vld [vmem:[#allocation5 + $0x1b8] sm:$0xff]
    %v1855 = vld [vmem:[#allocation5 + $0x1c0] sm:$0xff]
    %v1856 = vld [vmem:[#allocation5 + $0x1c8] sm:$0xff]
    %v1857 = vld [vmem:[#allocation5 + $0x1d0] sm:$0xff]
    %v1858 = vld [vmem:[#allocation5 + $0x1d8] sm:$0xff]
    %v1859 = vld [vmem:[#allocation5 + $0x1e0] sm:$0xff]
    %v1860 = vld [vmem:[#allocation5 + $0x1e8] sm:$0xff]
    %v1861 = vld [vmem:[#allocation5 + $0x1f0] sm:$0xff]
    %v1862 = vld [vmem:[#allocation5 + $0x1f8] sm:$0xff]
    %v1863 = vld [vmem:[#allocation5 + $0x200] sm:$0xff]
    %v1864 = vld [vmem:[#allocation5 + $0x208] sm:$0xff]
    %v1865 = vld [vmem:[#allocation5 + $0x210] sm:$0xff]
    %v1866 = vld [vmem:[#allocation5 + $0x218] sm:$0xff]
    %v1867 = vld [vmem:[#allocation5 + $0x220] sm:$0xff]
    %v1868 = vld [vmem:[#allocation5 + $0x228] sm:$0xff]
    %v1869 = vld [vmem:[#allocation5 + $0x230] sm:$0xff]
    %v1870 = vld [vmem:[#allocation5 + $0x238] sm:$0xff]
    %v1871 = vld [vmem:[#allocation5 + $0x240] sm:$0xff]
    %v1872 = vld [vmem:[#allocation5 + $0x248] sm:$0xff]
    %v1873 = vld [vmem:[#allocation5 + $0x250] sm:$0xff]
    %v1874 = vld [vmem:[#allocation5 + $0x258] sm:$0xff]
    %v1875 = vld [vmem:[#allocation5 + $0x260] sm:$0xff]
    %v1876 = vld [vmem:[#allocation5 + $0x268] sm:$0xff]
    %v1877 = vld [vmem:[#allocation5 + $0x270] sm:$0xff]
    %v1878 = vld [vmem:[#allocation5 + $0x278] sm:$0xff]
    %v1879 = vld [vmem:[#allocation5 + $0x280] sm:$0xff]
    %v1880 = vld [vmem:[#allocation5 + $0x288] sm:$0xff]
    %v1881 = vld [vmem:[#allocation5 + $0x290] sm:$0xff]
    %v1882 = vld [vmem:[#allocation5 + $0x298] sm:$0xff]
    %v1883 = vld [vmem:[#allocation5 + $0x2a0] sm:$0xff]
    %v1884 = vld [vmem:[#allocation5 + $0x2a8] sm:$0xff]
    %v1885 = vld [vmem:[#allocation5 + $0x2b0] sm:$0xff]
    %v1886 = vld [vmem:[#allocation5 + $0x2b8] sm:$0xff]
    %v1887 = vld [vmem:[#allocation5 + $0x2c0] sm:$0xff]
    %v1888 = vld [vmem:[#allocation5 + $0x2c8] sm:$0xff]
    %v1889 = vld [vmem:[#allocation5 + $0x2d0] sm:$0xff]
    %v1890 = vld [vmem:[#allocation5 + $0x2d8] sm:$0xff]
    %v1891 = vld [vmem:[#allocation5 + $0x2e0] sm:$0xff]
    %v1892 = vld [vmem:[#allocation5 + $0x2e8] sm:$0xff]
    %v1893 = vld [vmem:[#allocation5 + $0x2f0] sm:$0xff]
    %v1894 = vld [vmem:[#allocation5 + $0x2f8] sm:$0xff]
    %v1895 = vld [vmem:[#allocation5 + $0x300] sm:$0xff]
    %v1896 = vld [vmem:[#allocation5 + $0x308] sm:$0xff]
    %v1897 = vld [vmem:[#allocation5 + $0x310] sm:$0xff]
    %v1898 = vld [vmem:[#allocation5 + $0x318] sm:$0xff]
    %v1899 = vld [vmem:[#allocation5 + $0x320] sm:$0xff]
    %v1900 = vld [vmem:[#allocation5 + $0x328] sm:$0xff]
    %v1901 = vld [vmem:[#allocation5 + $0x330] sm:$0xff]
    %v1902 = vld [vmem:[#allocation5 + $0x338] sm:$0xff]
    %v1903 = vld [vmem:[#allocation5 + $0x340] sm:$0xff]
    %v1904 = vld [vmem:[#allocation5 + $0x348] sm:$0xff]
    %v1905 = vld [vmem:[#allocation5 + $0x350] sm:$0xff]
    %v1906 = vld [vmem:[#allocation5 + $0x358] sm:$0xff]
    %v1907 = vld [vmem:[#allocation5 + $0x360] sm:$0xff]
    %v1908 = vld [vmem:[#allocation5 + $0x368] sm:$0xff]
    %v1909 = vld [vmem:[#allocation5 + $0x370] sm:$0xff]
    %v1910 = vld [vmem:[#allocation5 + $0x378] sm:$0xff]
    %v1911 = vld [vmem:[#allocation5 + $0x380] sm:$0xff]
    %v1912 = vld [vmem:[#allocation5 + $0x388] sm:$0xff]
    %v1913 = vld [vmem:[#allocation5 + $0x390] sm:$0xff]
    %v1914 = vld [vmem:[#allocation5 + $0x398] sm:$0xff]
    %v1915 = vld [vmem:[#allocation5 + $0x3a0] sm:$0xff]
    %v1916 = vld [vmem:[#allocation5 + $0x3a8] sm:$0xff]
    %v1917 = vld [vmem:[#allocation5 + $0x3b0] sm:$0xff]
    %v1918 = vld [vmem:[#allocation5 + $0x3b8] sm:$0xff]
    %v1919 = vld [vmem:[#allocation5 + $0x3c0] sm:$0xff]
    %v1920 = vld [vmem:[#allocation5 + $0x3c8] sm:$0xff]
    %v1921 = vld [vmem:[#allocation5 + $0x3d0] sm:$0xff]
    %v1922 = vld [vmem:[#allocation5 + $0x3d8] sm:$0xff]
    %v1923 = vld [vmem:[#allocation5 + $0x3e0] sm:$0xff]
    %v1924 = vld [vmem:[#allocation5 + $0x3e8] sm:$0xff]
    %v1925 = vld [vmem:[#allocation5 + $0x3f0] sm:$0xff]
    %v1926 = vld [vmem:[#allocation5 + $0x3f8] sm:$0xff]
    %v1927 = vld [vmem:[%s4] sm:$0xf]
    %v1929 = vperm.slane %v1927, 0
    %v1930 = vperm.slane %v1927, 1
    %v1931 = vperm.slane %v1927, 2
    %v1932 = vperm.slane %v1927, 3
    %v2065 = vunpack.c.l.b16 %v1799
    %v2066 = vunpack.c.h.b16 %v1799
    %v2067 = vunpack.c.l.b16 %v1800
    %v2068 = vunpack.c.h.b16 %v1800
    %v2069 = vunpack.c.l.b16 %v1801
    %v2070 = vunpack.c.h.b16 %v1801
    %v2071 = vunpack.c.l.b16 %v1802
    %v2072 = vunpack.c.h.b16 %v1802
    %v2073 = vunpack.c.l.b16 %v1803
    %v2074 = vunpack.c.h.b16 %v1803
    %v2075 = vunpack.c.l.b16 %v1804
    %v2076 = vunpack.c.h.b16 %v1804
    %v2077 = vunpack.c.l.b16 %v1805
    %v2078 = vunpack.c.h.b16 %v1805
    %v2079 = vunpack.c.l.b16 %v1806
    %v2080 = vunpack.c.h.b16 %v1806
    %v2081 = vunpack.c.l.b16 %v1807
    %v2082 = vunpack.c.h.b16 %v1807
    %v2083 = vunpack.c.l.b16 %v1808
    %v2084 = vunpack.c.h.b16 %v1808
    %v2085 = vunpack.c.l.b16 %v1809
    %v2086 = vunpack.c.h.b16 %v1809
    %v2087 = vunpack.c.l.b16 %v1810
    %v2088 = vunpack.c.h.b16 %v1810
    %v2089 = vunpack.c.l.b16 %v1811
    %v2090 = vunpack.c.h.b16 %v1811
    %v2091 = vunpack.c.l.b16 %v1812
    %v2092 = vunpack.c.h.b16 %v1812
    %v2093 = vunpack.c.l.b16 %v1813
    %v2094 = vunpack.c.h.b16 %v1813
    %v2095 = vunpack.c.l.b16 %v1814
    %v2096 = vunpack.c.h.b16 %v1814
    %v2097 = vunpack.c.l.b16 %v1815
    %v2098 = vunpack.c.h.b16 %v1815
    %v2099 = vunpack.c.l.b16 %v1816
    %v2100 = vunpack.c.h.b16 %v1816
    %v2101 = vunpack.c.l.b16 %v1817
    %v2102 = vunpack.c.h.b16 %v1817
    %v2103 = vunpack.c.l.b16 %v1818
    %v2104 = vunpack.c.h.b16 %v1818
    %v2105 = vunpack.c.l.b16 %v1819
    %v2106 = vunpack.c.h.b16 %v1819
    %v2107 = vunpack.c.l.b16 %v1820
    %v2108 = vunpack.c.h.b16 %v1820
    %v2109 = vunpack.c.l.b16 %v1821
    %v2110 = vunpack.c.h.b16 %v1821
    %v2111 = vunpack.c.l.b16 %v1822
    %v2112 = vunpack.c.h.b16 %v1822
    %v2113 = vunpack.c.l.b16 %v1823
    %v2114 = vunpack.c.h.b16 %v1823
    %v2115 = vunpack.c.l.b16 %v1824
    %v2116 = vunpack.c.h.b16 %v1824
    %v2117 = vunpack.c.l.b16 %v1825
    %v2118 = vunpack.c.h.b16 %v1825
    %v2119 = vunpack.c.l.b16 %v1826
    %v2120 = vunpack.c.h.b16 %v1826
    %v2121 = vunpack.c.l.b16 %v1827
    %v2122 = vunpack.c.h.b16 %v1827
    %v2123 = vunpack.c.l.b16 %v1828
    %v2124 = vunpack.c.h.b16 %v1828
    %v2125 = vunpack.c.l.b16 %v1829
    %v2126 = vunpack.c.h.b16 %v1829
    %v2127 = vunpack.c.l.b16 %v1830
    %v2128 = vunpack.c.h.b16 %v1830
    %v2129 = vunpack.c.l.b16 %v1831
    %v2130 = vunpack.c.h.b16 %v1831
    %v2131 = vunpack.c.l.b16 %v1832
    %v2132 = vunpack.c.h.b16 %v1832
    %v2133 = vunpack.c.l.b16 %v1833
    %v2134 = vunpack.c.h.b16 %v1833
    %v2135 = vunpack.c.l.b16 %v1834
    %v2136 = vunpack.c.h.b16 %v1834
    %v2137 = vunpack.c.l.b16 %v1835
    %v2138 = vunpack.c.h.b16 %v1835
    %v2139 = vunpack.c.l.b16 %v1836
    %v2140 = vunpack.c.h.b16 %v1836
    %v2141 = vunpack.c.l.b16 %v1837
    %v2142 = vunpack.c.h.b16 %v1837
    %v2143 = vunpack.c.l.b16 %v1838
    %v2144 = vunpack.c.h.b16 %v1838
    %v2145 = vunpack.c.l.b16 %v1839
    %v2146 = vunpack.c.h.b16 %v1839
    %v2147 = vunpack.c.l.b16 %v1840
    %v2148 = vunpack.c.h.b16 %v1840
    %v2149 = vunpack.c.l.b16 %v1841
    %v2150 = vunpack.c.h.b16 %v1841
    %v2151 = vunpack.c.l.b16 %v1842
    %v2152 = vunpack.c.h.b16 %v1842
    %v2153 = vunpack.c.l.b16 %v1843
    %v2154 = vunpack.c.h.b16 %v1843
    %v2155 = vunpack.c.l.b16 %v1844
    %v2156 = vunpack.c.h.b16 %v1844
    %v2157 = vunpack.c.l.b16 %v1845
    %v2158 = vunpack.c.h.b16 %v1845
    %v2159 = vunpack.c.l.b16 %v1846
    %v2160 = vunpack.c.h.b16 %v1846
    %v2161 = vunpack.c.l.b16 %v1847
    %v2162 = vunpack.c.h.b16 %v1847
    %v2163 = vunpack.c.l.b16 %v1848
    %v2164 = vunpack.c.h.b16 %v1848
    %v2165 = vunpack.c.l.b16 %v1849
    %v2166 = vunpack.c.h.b16 %v1849
    %v2167 = vunpack.c.l.b16 %v1850
    %v2168 = vunpack.c.h.b16 %v1850
    %v2169 = vunpack.c.l.b16 %v1851
    %v2170 = vunpack.c.h.b16 %v1851
    %v2171 = vunpack.c.l.b16 %v1852
    %v2172 = vunpack.c.h.b16 %v1852
    %v2173 = vunpack.c.l.b16 %v1853
    %v2174 = vunpack.c.h.b16 %v1853
    %v2175 = vunpack.c.l.b16 %v1854
    %v2176 = vunpack.c.h.b16 %v1854
    %v2177 = vunpack.c.l.b16 %v1855
    %v2178 = vunpack.c.h.b16 %v1855
    %v2179 = vunpack.c.l.b16 %v1856
    %v2180 = vunpack.c.h.b16 %v1856
    %v2181 = vunpack.c.l.b16 %v1857
    %v2182 = vunpack.c.h.b16 %v1857
    %v2183 = vunpack.c.l.b16 %v1858
    %v2184 = vunpack.c.h.b16 %v1858
    %v2185 = vunpack.c.l.b16 %v1859
    %v2186 = vunpack.c.h.b16 %v1859
    %v2187 = vunpack.c.l.b16 %v1860
    %v2188 = vunpack.c.h.b16 %v1860
    %v2189 = vunpack.c.l.b16 %v1861
    %v2190 = vunpack.c.h.b16 %v1861
    %v2191 = vunpack.c.l.b16 %v1862
    %v2192 = vunpack.c.h.b16 %v1862
    %v2193 = vunpack.c.l.b16 %v1863
    %v2194 = vunpack.c.h.b16 %v1863
    %v2195 = vunpack.c.l.b16 %v1864
    %v2196 = vunpack.c.h.b16 %v1864
    %v2197 = vunpack.c.l.b16 %v1865
    %v2198 = vunpack.c.h.b16 %v1865
    %v2199 = vunpack.c.l.b16 %v1866
    %v2200 = vunpack.c.h.b16 %v1866
    %v2201 = vunpack.c.l.b16 %v1867
    %v2202 = vunpack.c.h.b16 %v1867
    %v2203 = vunpack.c.l.b16 %v1868
    %v2204 = vunpack.c.h.b16 %v1868
    %v2205 = vunpack.c.l.b16 %v1869
    %v2206 = vunpack.c.h.b16 %v1869
    %v2207 = vunpack.c.l.b16 %v1870
    %v2208 = vunpack.c.h.b16 %v1870
    %v2209 = vunpack.c.l.b16 %v1871
    %v2210 = vunpack.c.h.b16 %v1871
    %v2211 = vunpack.c.l.b16 %v1872
    %v2212 = vunpack.c.h.b16 %v1872
    %v2213 = vunpack.c.l.b16 %v1873
    %v2214 = vunpack.c.h.b16 %v1873
    %v2215 = vunpack.c.l.b16 %v1874
    %v2216 = vunpack.c.h.b16 %v1874
    %v2217 = vunpack.c.l.b16 %v1875
    %v2218 = vunpack.c.h.b16 %v1875
    %v2219 = vunpack.c.l.b16 %v1876
    %v2220 = vunpack.c.h.b16 %v1876
    %v2221 = vunpack.c.l.b16 %v1877
    %v2222 = vunpack.c.h.b16 %v1877
    %v2223 = vunpack.c.l.b16 %v1878
    %v2224 = vunpack.c.h.b16 %v1878
    %v2225 = vunpack.c.l.b16 %v1879
    %v2226 = vunpack.c.h.b16 %v1879
    %v2227 = vunpack.c.l.b16 %v1880
    %v2228 = vunpack.c.h.b16 %v1880
    %v2229 = vunpack.c.l.b16 %v1881
    %v2230 = vunpack.c.h.b16 %v1881
    %v2231 = vunpack.c.l.b16 %v1882
    %v2232 = vunpack.c.h.b16 %v1882
    %v2233 = vunpack.c.l.b16 %v1883
    %v2234 = vunpack.c.h.b16 %v1883
    %v2235 = vunpack.c.l.b16 %v1884
    %v2236 = vunpack.c.h.b16 %v1884
    %v2237 = vunpack.c.l.b16 %v1885
    %v2238 = vunpack.c.h.b16 %v1885
    %v2239 = vunpack.c.l.b16 %v1886
    %v2240 = vunpack.c.h.b16 %v1886
    %v2241 = vunpack.c.l.b16 %v1887
    %v2242 = vunpack.c.h.b16 %v1887
    %v2243 = vunpack.c.l.b16 %v1888
    %v2244 = vunpack.c.h.b16 %v1888
    %v2245 = vunpack.c.l.b16 %v1889
    %v2246 = vunpack.c.h.b16 %v1889
    %v2247 = vunpack.c.l.b16 %v1890
    %v2248 = vunpack.c.h.b16 %v1890
    %v2249 = vunpack.c.l.b16 %v1891
    %v2250 = vunpack.c.h.b16 %v1891
    %v2251 = vunpack.c.l.b16 %v1892
    %v2252 = vunpack.c.h.b16 %v1892
    %v2253 = vunpack.c.l.b16 %v1893
    %v2254 = vunpack.c.h.b16 %v1893
    %v2255 = vunpack.c.l.b16 %v1894
    %v2256 = vunpack.c.h.b16 %v1894
    %v2257 = vunpack.c.l.b16 %v1895
    %v2258 = vunpack.c.h.b16 %v1895
    %v2259 = vunpack.c.l.b16 %v1896
    %v2260 = vunpack.c.h.b16 %v1896
    %v2261 = vunpack.c.l.b16 %v1897
    %v2262 = vunpack.c.h.b16 %v1897
    %v2263 = vunpack.c.l.b16 %v1898
    %v2264 = vunpack.c.h.b16 %v1898
    %v2265 = vunpack.c.l.b16 %v1899
    %v2266 = vunpack.c.h.b16 %v1899
    %v2267 = vunpack.c.l.b16 %v1900
    %v2268 = vunpack.c.h.b16 %v1900
    %v2269 = vunpack.c.l.b16 %v1901
    %v2270 = vunpack.c.h.b16 %v1901
    %v2271 = vunpack.c.l.b16 %v1902
    %v2272 = vunpack.c.h.b16 %v1902
    %v2273 = vunpack.c.l.b16 %v1903
    %v2274 = vunpack.c.h.b16 %v1903
    %v2275 = vunpack.c.l.b16 %v1904
    %v2276 = vunpack.c.h.b16 %v1904
    %v2277 = vunpack.c.l.b16 %v1905
    %v2278 = vunpack.c.h.b16 %v1905
    %v2279 = vunpack.c.l.b16 %v1906
    %v2280 = vunpack.c.h.b16 %v1906
    %v2281 = vunpack.c.l.b16 %v1907
    %v2282 = vunpack.c.h.b16 %v1907
    %v2283 = vunpack.c.l.b16 %v1908
    %v2284 = vunpack.c.h.b16 %v1908
    %v2285 = vunpack.c.l.b16 %v1909
    %v2286 = vunpack.c.h.b16 %v1909
    %v2287 = vunpack.c.l.b16 %v1910
    %v2288 = vunpack.c.h.b16 %v1910
    %v2289 = vunpack.c.l.b16 %v1911
    %v2290 = vunpack.c.h.b16 %v1911
    %v2291 = vunpack.c.l.b16 %v1912
    %v2292 = vunpack.c.h.b16 %v1912
    %v2293 = vunpack.c.l.b16 %v1913
    %v2294 = vunpack.c.h.b16 %v1913
    %v2295 = vunpack.c.l.b16 %v1914
    %v2296 = vunpack.c.h.b16 %v1914
    %v2297 = vunpack.c.l.b16 %v1915
    %v2298 = vunpack.c.h.b16 %v1915
    %v2299 = vunpack.c.l.b16 %v1916
    %v2300 = vunpack.c.h.b16 %v1916
    %v2301 = vunpack.c.l.b16 %v1917
    %v2302 = vunpack.c.h.b16 %v1917
    %v2303 = vunpack.c.l.b16 %v1918
    %v2304 = vunpack.c.h.b16 %v1918
    %v2305 = vunpack.c.l.b16 %v1919
    %v2306 = vunpack.c.h.b16 %v1919
    %v2307 = vunpack.c.l.b16 %v1920
    %v2308 = vunpack.c.h.b16 %v1920
    %v2309 = vunpack.c.l.b16 %v1921
    %v2310 = vunpack.c.h.b16 %v1921
    %v2311 = vunpack.c.l.b16 %v1922
    %v2312 = vunpack.c.h.b16 %v1922
    %v2313 = vunpack.c.l.b16 %v1923
    %v2314 = vunpack.c.h.b16 %v1923
    %v2315 = vunpack.c.l.b16 %v1924
    %v2316 = vunpack.c.h.b16 %v1924
    %v2317 = vunpack.c.l.b16 %v1925
    %v2318 = vunpack.c.h.b16 %v1925
    %v2319 = vunpack.c.l.b16 %v1926
    %v2320 = vunpack.c.h.b16 %v1926
    %v2321 = vpack.c.b16 %v2069, %v2065
    %v2322 = vpack.c.b16 %v2070, %v2066
    %v2323 = vpack.c.b16 %v2071, %v2067
    %v2324 = vpack.c.b16 %v2072, %v2068
    %v2325 = vpack.c.b16 %v2077, %v2073
    %v2326 = vpack.c.b16 %v2078, %v2074
    %v2327 = vpack.c.b16 %v2079, %v2075
    %v2328 = vpack.c.b16 %v2080, %v2076
    %v2329 = vpack.c.b16 %v2085, %v2081
    %v2330 = vpack.c.b16 %v2086, %v2082
    %v2331 = vpack.c.b16 %v2087, %v2083
    %v2332 = vpack.c.b16 %v2088, %v2084
    %v2333 = vpack.c.b16 %v2093, %v2089
    %v2334 = vpack.c.b16 %v2094, %v2090
    %v2335 = vpack.c.b16 %v2095, %v2091
    %v2336 = vpack.c.b16 %v2096, %v2092
    %v2337 = vpack.c.b16 %v2101, %v2097
    %v2338 = vpack.c.b16 %v2102, %v2098
    %v2339 = vpack.c.b16 %v2103, %v2099
    %v2340 = vpack.c.b16 %v2104, %v2100
    %v2341 = vpack.c.b16 %v2109, %v2105
    %v2342 = vpack.c.b16 %v2110, %v2106
    %v2343 = vpack.c.b16 %v2111, %v2107
    %v2344 = vpack.c.b16 %v2112, %v2108
    %v2345 = vpack.c.b16 %v2117, %v2113
    %v2346 = vpack.c.b16 %v2118, %v2114
    %v2347 = vpack.c.b16 %v2119, %v2115
    %v2348 = vpack.c.b16 %v2120, %v2116
    %v2349 = vpack.c.b16 %v2125, %v2121
    %v2350 = vpack.c.b16 %v2126, %v2122
    %v2351 = vpack.c.b16 %v2127, %v2123
    %v2352 = vpack.c.b16 %v2128, %v2124
    %v2353 = vpack.c.b16 %v2133, %v2129
    %v2354 = vpack.c.b16 %v2134, %v2130
    %v2355 = vpack.c.b16 %v2135, %v2131
    %v2356 = vpack.c.b16 %v2136, %v2132
    %v2357 = vpack.c.b16 %v2141, %v2137
    %v2358 = vpack.c.b16 %v2142, %v2138
    %v2359 = vpack.c.b16 %v2143, %v2139
    %v2360 = vpack.c.b16 %v2144, %v2140
    %v2361 = vpack.c.b16 %v2149, %v2145
    %v2362 = vpack.c.b16 %v2150, %v2146
    %v2363 = vpack.c.b16 %v2151, %v2147
    %v2364 = vpack.c.b16 %v2152, %v2148
    %v2365 = vpack.c.b16 %v2157, %v2153
    %v2366 = vpack.c.b16 %v2158, %v2154
    %v2367 = vpack.c.b16 %v2159, %v2155
    %v2368 = vpack.c.b16 %v2160, %v2156
    %v2369 = vpack.c.b16 %v2165, %v2161
    %v2370 = vpack.c.b16 %v2166, %v2162
    %v2371 = vpack.c.b16 %v2167, %v2163
    %v2372 = vpack.c.b16 %v2168, %v2164
    %v2373 = vpack.c.b16 %v2173, %v2169
    %v2374 = vpack.c.b16 %v2174, %v2170
    %v2375 = vpack.c.b16 %v2175, %v2171
    %v2376 = vpack.c.b16 %v2176, %v2172
    %v2377 = vpack.c.b16 %v2181, %v2177
    %v2378 = vpack.c.b16 %v2182, %v2178
    %v2379 = vpack.c.b16 %v2183, %v2179
    %v2380 = vpack.c.b16 %v2184, %v2180
    %v2381 = vpack.c.b16 %v2189, %v2185
    %v2382 = vpack.c.b16 %v2190, %v2186
    %v2383 = vpack.c.b16 %v2191, %v2187
    %v2384 = vpack.c.b16 %v2192, %v2188
    %v2385 = vpack.c.b16 %v2197, %v2193
    %v2386 = vpack.c.b16 %v2198, %v2194
    %v2387 = vpack.c.b16 %v2199, %v2195
    %v2388 = vpack.c.b16 %v2200, %v2196
    %v2389 = vpack.c.b16 %v2205, %v2201
    %v2390 = vpack.c.b16 %v2206, %v2202
    %v2391 = vpack.c.b16 %v2207, %v2203
    %v2392 = vpack.c.b16 %v2208, %v2204
    %v2393 = vpack.c.b16 %v2213, %v2209
    %v2394 = vpack.c.b16 %v2214, %v2210
    %v2395 = vpack.c.b16 %v2215, %v2211
    %v2396 = vpack.c.b16 %v2216, %v2212
    %v2397 = vpack.c.b16 %v2221, %v2217
    %v2398 = vpack.c.b16 %v2222, %v2218
    %v2399 = vpack.c.b16 %v2223, %v2219
    %v2400 = vpack.c.b16 %v2224, %v2220
    %v2401 = vpack.c.b16 %v2229, %v2225
    %v2402 = vpack.c.b16 %v2230, %v2226
    %v2403 = vpack.c.b16 %v2231, %v2227
    %v2404 = vpack.c.b16 %v2232, %v2228
    %v2405 = vpack.c.b16 %v2237, %v2233
    %v2406 = vpack.c.b16 %v2238, %v2234
    %v2407 = vpack.c.b16 %v2239, %v2235
    %v2408 = vpack.c.b16 %v2240, %v2236
    %v2409 = vpack.c.b16 %v2245, %v2241
    %v2410 = vpack.c.b16 %v2246, %v2242
    %v2411 = vpack.c.b16 %v2247, %v2243
    %v2412 = vpack.c.b16 %v2248, %v2244
    %v2413 = vpack.c.b16 %v2253, %v2249
    %v2414 = vpack.c.b16 %v2254, %v2250
    %v2415 = vpack.c.b16 %v2255, %v2251
    %v2416 = vpack.c.b16 %v2256, %v2252
    %v2417 = vpack.c.b16 %v2261, %v2257
    %v2418 = vpack.c.b16 %v2262, %v2258
    %v2419 = vpack.c.b16 %v2263, %v2259
    %v2420 = vpack.c.b16 %v2264, %v2260
    %v2421 = vpack.c.b16 %v2269, %v2265
    %v2422 = vpack.c.b16 %v2270, %v2266
    %v2423 = vpack.c.b16 %v2271, %v2267
    %v2424 = vpack.c.b16 %v2272, %v2268
    %v2425 = vpack.c.b16 %v2277, %v2273
    %v2426 = vpack.c.b16 %v2278, %v2274
    %v2427 = vpack.c.b16 %v2279, %v2275
    %v2428 = vpack.c.b16 %v2280, %v2276
    %v2429 = vpack.c.b16 %v2285, %v2281
    %v2430 = vpack.c.b16 %v2286, %v2282
    %v2431 = vpack.c.b16 %v2287, %v2283
    %v2432 = vpack.c.b16 %v2288, %v2284
    %v2433 = vpack.c.b16 %v2293, %v2289
    %v2434 = vpack.c.b16 %v2294, %v2290
    %v2435 = vpack.c.b16 %v2295, %v2291
    %v2436 = vpack.c.b16 %v2296, %v2292
    %v2437 = vpack.c.b16 %v2301, %v2297
    %v2438 = vpack.c.b16 %v2302, %v2298
    %v2439 = vpack.c.b16 %v2303, %v2299
    %v2440 = vpack.c.b16 %v2304, %v2300
    %v2441 = vpack.c.b16 %v2309, %v2305
    %v2442 = vpack.c.b16 %v2310, %v2306
    %v2443 = vpack.c.b16 %v2311, %v2307
    %v2444 = vpack.c.b16 %v2312, %v2308
    %v2445 = vpack.c.b16 %v2317, %v2313
    %v2446 = vpack.c.b16 %v2318, %v2314
    %v2447 = vpack.c.b16 %v2319, %v2315
    %v2448 = vpack.c.b16 %v2320, %v2316
    %2577 = vmatpush.bf16.msra.mxu0 %v2349
    %2578 = vmatpush.bf16.msra.mxu0 %v2345
    %2579 = vmatpush.bf16.msra.mxu0 %v2341
    %2580 = vmatpush.bf16.msra.mxu0 %v2337
    %2581 = vmatpush.bf16.msra.mxu0 %v2333
    %2582 = vmatpush.bf16.msra.mxu0 %v2329
    %2583 = vmatpush.bf16.msra.mxu0 %v2325
    %2584 = vmatpush.bf16.msra.mxu0 %v2321
    %2585 = vmatmul.bf16.gmra.mxu0 %v1795
    %v2586 = vpop.f32.mrf.mxu0
    %v2587 = vadd.f32 %v1929, %v2586
    %v2588 = vpop.f32.mrf.mxu0
    %2589 = vdwg.mxu0
    %2590 = vmatpush.bf16.msra.mxu0 %v2381
    %2591 = vmatpush.bf16.msra.mxu0 %v2377
    %2592 = vmatpush.bf16.msra.mxu0 %v2373
    %2593 = vmatpush.bf16.msra.mxu0 %v2369
    %2594 = vmatpush.bf16.msra.mxu0 %v2365
    %2595 = vmatpush.bf16.msra.mxu0 %v2361
    %2596 = vmatpush.bf16.msra.mxu0 %v2357
    %2597 = vmatpush.bf16.msra.mxu0 %v2353
    %2598 = vmatmul.bf16.gmra.mxu0 %v1796
    %v2599 = vpop.f32.mrf.mxu0
    %v2600 = vadd.f32 %v2587, %v2599
    %v2601 = vpop.f32.mrf.mxu0
    %2602 = vdwg.mxu0
    %2603 = vmatpush.bf16.msra.mxu0 %v2413
    %2604 = vmatpush.bf16.msra.mxu0 %v2409
    %2605 = vmatpush.bf16.msra.mxu0 %v2405
    %2606 = vmatpush.bf16.msra.mxu0 %v2401
    %2607 = vmatpush.bf16.msra.mxu0 %v2397
    %2608 = vmatpush.bf16.msra.mxu0 %v2393
    %2609 = vmatpush.bf16.msra.mxu0 %v2389
    %2610 = vmatpush.bf16.msra.mxu0 %v2385
    %2611 = vmatmul.bf16.gmra.mxu0 %v1797
    %v2612 = vpop.f32.mrf.mxu0
    %v2613 = vadd.f32 %v2600, %v2612
    %v2614 = vpop.f32.mrf.mxu0
    %2615 = vdwg.mxu0
    %2616 = vmatpush.bf16.msra.mxu0 %v2445
    %2617 = vmatpush.bf16.msra.mxu0 %v2441
    %2618 = vmatpush.bf16.msra.mxu0 %v2437
    %2619 = vmatpush.bf16.msra.mxu0 %v2433
    %2620 = vmatpush.bf16.msra.mxu0 %v2429
    %2621 = vmatpush.bf16.msra.mxu0 %v2425
    %2622 = vmatpush.bf16.msra.mxu0 %v2421
    %2623 = vmatpush.bf16.msra.mxu0 %v2417
    %2624 = vmatmul.bf16.gmra.mxu0 %v1798
    %v2625 = vpop.f32.mrf.mxu0
    %v2626 = vadd.f32 %v2613, %v2625
    %v2627 = vpop.f32.mrf.mxu0
    %2628 = vdwg.mxu0
    %2629 = vmatpush.bf16.msra.mxu0 %v2350
    %2630 = vmatpush.bf16.msra.mxu0 %v2346
    %2631 = vmatpush.bf16.msra.mxu0 %v2342
    %2632 = vmatpush.bf16.msra.mxu0 %v2338
    %2633 = vmatpush.bf16.msra.mxu0 %v2334
    %2634 = vmatpush.bf16.msra.mxu0 %v2330
    %2635 = vmatpush.bf16.msra.mxu0 %v2326
    %2636 = vmatpush.bf16.msra.mxu0 %v2322
    %2637 = vmatmul.bf16.gmra.mxu0 %v1795
    %v2638 = vpop.f32.mrf.mxu0
    %v2639 = vadd.f32 %v1930, %v2638
    %v2640 = vpop.f32.mrf.mxu0
    %2641 = vdwg.mxu0
    %2642 = vmatpush.bf16.msra.mxu0 %v2382
    %2643 = vmatpush.bf16.msra.mxu0 %v2378
    %2644 = vmatpush.bf16.msra.mxu0 %v2374
    %2645 = vmatpush.bf16.msra.mxu0 %v2370
    %2646 = vmatpush.bf16.msra.mxu0 %v2366
    %2647 = vmatpush.bf16.msra.mxu0 %v2362
    %2648 = vmatpush.bf16.msra.mxu0 %v2358
    %2649 = vmatpush.bf16.msra.mxu0 %v2354
    %2650 = vmatmul.bf16.gmra.mxu0 %v1796
    %v2651 = vpop.f32.mrf.mxu0
    %v2652 = vadd.f32 %v2639, %v2651
    %v2653 = vpop.f32.mrf.mxu0
    %2654 = vdwg.mxu0
    %2655 = vmatpush.bf16.msra.mxu0 %v2414
    %2656 = vmatpush.bf16.msra.mxu0 %v2410
    %2657 = vmatpush.bf16.msra.mxu0 %v2406
    %2658 = vmatpush.bf16.msra.mxu0 %v2402
    %2659 = vmatpush.bf16.msra.mxu0 %v2398
    %2660 = vmatpush.bf16.msra.mxu0 %v2394
    %2661 = vmatpush.bf16.msra.mxu0 %v2390
    %2662 = vmatpush.bf16.msra.mxu0 %v2386
    %2663 = vmatmul.bf16.gmra.mxu0 %v1797
    %v2664 = vpop.f32.mrf.mxu0
    %v2665 = vadd.f32 %v2652, %v2664
    %v2666 = vpop.f32.mrf.mxu0
    %2667 = vdwg.mxu0
    %2668 = vmatpush.bf16.msra.mxu0 %v2446
    %2669 = vmatpush.bf16.msra.mxu0 %v2442
    %2670 = vmatpush.bf16.msra.mxu0 %v2438
    %2671 = vmatpush.bf16.msra.mxu0 %v2434
    %2672 = vmatpush.bf16.msra.mxu0 %v2430
    %2673 = vmatpush.bf16.msra.mxu0 %v2426
    %2674 = vmatpush.bf16.msra.mxu0 %v2422
    %2675 = vmatpush.bf16.msra.mxu0 %v2418
    %2676 = vmatmul.bf16.gmra.mxu0 %v1798
    %v2677 = vpop.f32.mrf.mxu0
    %v2678 = vadd.f32 %v2665, %v2677
    %v2679 = vpop.f32.mrf.mxu0
    %2680 = vdwg.mxu0
    %2681 = vmatpush.bf16.msra.mxu0 %v2351
    %2682 = vmatpush.bf16.msra.mxu0 %v2347
    %2683 = vmatpush.bf16.msra.mxu0 %v2343
    %2684 = vmatpush.bf16.msra.mxu0 %v2339
    %2685 = vmatpush.bf16.msra.mxu0 %v2335
    %2686 = vmatpush.bf16.msra.mxu0 %v2331
    %2687 = vmatpush.bf16.msra.mxu0 %v2327
    %2688 = vmatpush.bf16.msra.mxu0 %v2323
    %2689 = vmatmul.bf16.gmra.mxu0 %v1795
    %v2690 = vpop.f32.mrf.mxu0
    %v2691 = vadd.f32 %v1931, %v2690
    %v2692 = vpop.f32.mrf.mxu0
    %2693 = vdwg.mxu0
    %2694 = vmatpush.bf16.msra.mxu0 %v2383
    %2695 = vmatpush.bf16.msra.mxu0 %v2379
    %2696 = vmatpush.bf16.msra.mxu0 %v2375
    %2697 = vmatpush.bf16.msra.mxu0 %v2371
    %2698 = vmatpush.bf16.msra.mxu0 %v2367
    %2699 = vmatpush.bf16.msra.mxu0 %v2363
    %2700 = vmatpush.bf16.msra.mxu0 %v2359
    %2701 = vmatpush.bf16.msra.mxu0 %v2355
    %2702 = vmatmul.bf16.gmra.mxu0 %v1796
    %v2703 = vpop.f32.mrf.mxu0
    %v2704 = vadd.f32 %v2691, %v2703
    %v2705 = vpop.f32.mrf.mxu0
    %2706 = vdwg.mxu0
    %2707 = vmatpush.bf16.msra.mxu0 %v2415
    %2708 = vmatpush.bf16.msra.mxu0 %v2411
    %2709 = vmatpush.bf16.msra.mxu0 %v2407
    %2710 = vmatpush.bf16.msra.mxu0 %v2403
    %2711 = vmatpush.bf16.msra.mxu0 %v2399
    %2712 = vmatpush.bf16.msra.mxu0 %v2395
    %2713 = vmatpush.bf16.msra.mxu0 %v2391
    %2714 = vmatpush.bf16.msra.mxu0 %v2387
    %2715 = vmatmul.bf16.gmra.mxu0 %v1797
    %v2716 = vpop.f32.mrf.mxu0
    %v2717 = vadd.f32 %v2704, %v2716
    %v2718 = vpop.f32.mrf.mxu0
    %2719 = vdwg.mxu0
    %2720 = vmatpush.bf16.msra.mxu0 %v2447
    %2721 = vmatpush.bf16.msra.mxu0 %v2443
    %2722 = vmatpush.bf16.msra.mxu0 %v2439
    %2723 = vmatpush.bf16.msra.mxu0 %v2435
    %2724 = vmatpush.bf16.msra.mxu0 %v2431
    %2725 = vmatpush.bf16.msra.mxu0 %v2427
    %2726 = vmatpush.bf16.msra.mxu0 %v2423
    %2727 = vmatpush.bf16.msra.mxu0 %v2419
    %2728 = vmatmul.bf16.gmra.mxu0 %v1798
    %v2729 = vpop.f32.mrf.mxu0
    %v2730 = vadd.f32 %v2717, %v2729
    %v2731 = vpop.f32.mrf.mxu0
    %2732 = vdwg.mxu0
    %2733 = vmatpush.bf16.msra.mxu0 %v2352
    %2734 = vmatpush.bf16.msra.mxu0 %v2348
    %2735 = vmatpush.bf16.msra.mxu0 %v2344
    %2736 = vmatpush.bf16.msra.mxu0 %v2340
    %2737 = vmatpush.bf16.msra.mxu0 %v2336
    %2738 = vmatpush.bf16.msra.mxu0 %v2332
    %2739 = vmatpush.bf16.msra.mxu0 %v2328
    %2740 = vmatpush.bf16.msra.mxu0 %v2324
    %2741 = vmatmul.bf16.gmra.mxu0 %v1795
    %v2742 = vpop.f32.mrf.mxu0
    %v2743 = vadd.f32 %v1932, %v2742
    %v2744 = vpop.f32.mrf.mxu0
    %2745 = vdwg.mxu0
    %2746 = vmatpush.bf16.msra.mxu0 %v2384
    %2747 = vmatpush.bf16.msra.mxu0 %v2380
    %2748 = vmatpush.bf16.msra.mxu0 %v2376
    %2749 = vmatpush.bf16.msra.mxu0 %v2372
    %2750 = vmatpush.bf16.msra.mxu0 %v2368
    %2751 = vmatpush.bf16.msra.mxu0 %v2364
    %2752 = vmatpush.bf16.msra.mxu0 %v2360
    %2753 = vmatpush.bf16.msra.mxu0 %v2356
    %2754 = vmatmul.bf16.gmra.mxu0 %v1796
    %v2755 = vpop.f32.mrf.mxu0
    %v2756 = vadd.f32 %v2743, %v2755
    %v2757 = vpop.f32.mrf.mxu0
    %2758 = vdwg.mxu0
    %2759 = vmatpush.bf16.msra.mxu0 %v2416
    %2760 = vmatpush.bf16.msra.mxu0 %v2412
    %2761 = vmatpush.bf16.msra.mxu0 %v2408
    %2762 = vmatpush.bf16.msra.mxu0 %v2404
    %2763 = vmatpush.bf16.msra.mxu0 %v2400
    %2764 = vmatpush.bf16.msra.mxu0 %v2396
    %2765 = vmatpush.bf16.msra.mxu0 %v2392
    %2766 = vmatpush.bf16.msra.mxu0 %v2388
    %2767 = vmatmul.bf16.gmra.mxu0 %v1797
    %v2768 = vpop.f32.mrf.mxu0
    %v2769 = vadd.f32 %v2756, %v2768
    %v2770 = vpop.f32.mrf.mxu0
    %2771 = vdwg.mxu0
    %2772 = vmatpush.bf16.msra.mxu0 %v2448
    %2773 = vmatpush.bf16.msra.mxu0 %v2444
    %2774 = vmatpush.bf16.msra.mxu0 %v2440
    %2775 = vmatpush.bf16.msra.mxu0 %v2436
    %2776 = vmatpush.bf16.msra.mxu0 %v2432
    %2777 = vmatpush.bf16.msra.mxu0 %v2428
    %2778 = vmatpush.bf16.msra.mxu0 %v2424
    %2779 = vmatpush.bf16.msra.mxu0 %v2420
    %2780 = vmatmul.bf16.gmra.mxu0 %v1798
    %v2781 = vpop.f32.mrf.mxu0
    %v2782 = vadd.f32 %v2769, %v2781
    %v2783 = vpop.f32.mrf.mxu0
    %2784 = vdwg.mxu0
    %v2785 = vmax.f32 %v2626, 0.0
    %v2786 = vmax.f32 %v2678, 0.0
    %v2787 = vmax.f32 %v2730, 0.0
    %v2788 = vmax.f32 %v2782, 0.0
    %v2789 = vpack.c.bf16 %v2785, %v2785
    %v2790 = vpack.c.bf16 %v2786, %v2786
    %v2791 = vpack.c.bf16 %v2787, %v2787
    %v2792 = vpack.c.bf16 %v2788, %v2788
    %v2793 = vld [vmem:[%s5] sm:$0xf]
    %v2794 = vld [vmem:[%s5 + $0x4] sm:$0xf]
    %v2795 = vld [vmem:[%s5 + $0x8] sm:$0xf]
    %v2796 = vld [vmem:[%s5 + $0xc] sm:$0xf]
    %v2797 = vld [vmem:[%s5 + $0x10] sm:$0xf]
    %v2798 = vld [vmem:[%s5 + $0x14] sm:$0xf]
    %v2799 = vld [vmem:[%s5 + $0x18] sm:$0xf]
    %v2800 = vld [vmem:[%s5 + $0x1c] sm:$0xf]
    %v2801 = vld [vmem:[%s5 + $0x20] sm:$0xf]
    %v2802 = vld [vmem:[%s5 + $0x24] sm:$0xf]
    %v2803 = vld [vmem:[%s5 + $0x28] sm:$0xf]
    %v2804 = vld [vmem:[%s5 + $0x2c] sm:$0xf]
    %v2805 = vld [vmem:[%s5 + $0x30] sm:$0xf]
    %v2806 = vld [vmem:[%s5 + $0x34] sm:$0xf]
    %v2807 = vld [vmem:[%s5 + $0x38] sm:$0xf]
    %v2808 = vld [vmem:[%s5 + $0x3c] sm:$0xf]
    %v2809 = vld [vmem:[%s5 + $0x40] sm:$0xf]
    %v2810 = vld [vmem:[%s5 + $0x44] sm:$0xf]
    %v2811 = vld [vmem:[%s5 + $0x48] sm:$0xf]
    %v2812 = vld [vmem:[%s5 + $0x4c] sm:$0xf]
    %v2813 = vld [vmem:[%s5 + $0x50] sm:$0xf]
    %v2814 = vld [vmem:[%s5 + $0x54] sm:$0xf]
    %v2815 = vld [vmem:[%s5 + $0x58] sm:$0xf]
    %v2816 = vld [vmem:[%s5 + $0x5c] sm:$0xf]
    %v2817 = vld [vmem:[%s5 + $0x60] sm:$0xf]
    %v2818 = vld [vmem:[%s5 + $0x64] sm:$0xf]
    %v2819 = vld [vmem:[%s5 + $0x68] sm:$0xf]
    %v2820 = vld [vmem:[%s5 + $0x6c] sm:$0xf]
    %v2821 = vld [vmem:[%s5 + $0x70] sm:$0xf]
    %v2822 = vld [vmem:[%s5 + $0x74] sm:$0xf]
    %v2823 = vld [vmem:[%s5 + $0x78] sm:$0xf]
    %v2824 = vld [vmem:[%s5 + $0x7c] sm:$0xf]
    %v2825 = vld [vmem:[%s5 + $0x80] sm:$0xf]
    %v2826 = vld [vmem:[%s5 + $0x84] sm:$0xf]
    %v2827 = vld [vmem:[%s5 + $0x88] sm:$0xf]
    %v2828 = vld [vmem:[%s5 + $0x8c] sm:$0xf]
    %v2829 = vld [vmem:[%s5 + $0x90] sm:$0xf]
    %v2830 = vld [vmem:[%s5 + $0x94] sm:$0xf]
    %v2831 = vld [vmem:[%s5 + $0x98] sm:$0xf]
    %v2832 = vld [vmem:[%s5 + $0x9c] sm:$0xf]
    %v2833 = vld [vmem:[%s5 + $0xa0] sm:$0xf]
    %v2834 = vld [vmem:[%s5 + $0xa4] sm:$0xf]
    %v2835 = vld [vmem:[%s5 + $0xa8] sm:$0xf]
    %v2836 = vld [vmem:[%s5 + $0xac] sm:$0xf]
    %v2837 = vld [vmem:[%s5 + $0xb0] sm:$0xf]
    %v2838 = vld [vmem:[%s5 + $0xb4] sm:$0xf]
    %v2839 = vld [vmem:[%s5 + $0xb8] sm:$0xf]
    %v2840 = vld [vmem:[%s5 + $0xbc] sm:$0xf]
    %v2841 = vld [vmem:[%s5 + $0xc0] sm:$0xf]
    %v2842 = vld [vmem:[%s5 + $0xc4] sm:$0xf]
    %v2843 = vld [vmem:[%s5 + $0xc8] sm:$0xf]
    %v2844 = vld [vmem:[%s5 + $0xcc] sm:$0xf]
    %v2845 = vld [vmem:[%s5 + $0xd0] sm:$0xf]
    %v2846 = vld [vmem:[%s5 + $0xd4] sm:$0xf]
    %v2847 = vld [vmem:[%s5 + $0xd8] sm:$0xf]
    %v2848 = vld [vmem:[%s5 + $0xdc] sm:$0xf]
    %v2849 = vld [vmem:[%s5 + $0xe0] sm:$0xf]
    %v2850 = vld [vmem:[%s5 + $0xe4] sm:$0xf]
    %v2851 = vld [vmem:[%s5 + $0xe8] sm:$0xf]
    %v2852 = vld [vmem:[%s5 + $0xec] sm:$0xf]
    %v2853 = vld [vmem:[%s5 + $0xf0] sm:$0xf]
    %v2854 = vld [vmem:[%s5 + $0xf4] sm:$0xf]
    %v2855 = vld [vmem:[%s5 + $0xf8] sm:$0xf]
    %v2856 = vld [vmem:[%s5 + $0xfc] sm:$0xf]
    %v2857 = vld [vmem:[%s6] sm:$0x1]
    %v2859 = vperm.slane %v2857, 0
    %v2925 = vunpack.c.l.b16 %v2793
    %v2926 = vunpack.c.l.b16 %v2794
    %v2927 = vunpack.c.l.b16 %v2795
    %v2928 = vunpack.c.l.b16 %v2796
    %v2929 = vunpack.c.l.b16 %v2797
    %v2930 = vunpack.c.l.b16 %v2798
    %v2931 = vunpack.c.l.b16 %v2799
    %v2932 = vunpack.c.l.b16 %v2800
    %v2933 = vunpack.c.l.b16 %v2801
    %v2934 = vunpack.c.l.b16 %v2802
    %v2935 = vunpack.c.l.b16 %v2803
    %v2936 = vunpack.c.l.b16 %v2804
    %v2937 = vunpack.c.l.b16 %v2805
    %v2938 = vunpack.c.l.b16 %v2806
    %v2939 = vunpack.c.l.b16 %v2807
    %v2940 = vunpack.c.l.b16 %v2808
    %v2941 = vunpack.c.l.b16 %v2809
    %v2942 = vunpack.c.l.b16 %v2810
    %v2943 = vunpack.c.l.b16 %v2811
    %v2944 = vunpack.c.l.b16 %v2812
    %v2945 = vunpack.c.l.b16 %v2813
    %v2946 = vunpack.c.l.b16 %v2814
    %v2947 = vunpack.c.l.b16 %v2815
    %v2948 = vunpack.c.l.b16 %v2816
    %v2949 = vunpack.c.l.b16 %v2817
    %v2950 = vunpack.c.l.b16 %v2818
    %v2951 = vunpack.c.l.b16 %v2819
    %v2952 = vunpack.c.l.b16 %v2820
    %v2953 = vunpack.c.l.b16 %v2821
    %v2954 = vunpack.c.l.b16 %v2822
    %v2955 = vunpack.c.l.b16 %v2823
    %v2956 = vunpack.c.l.b16 %v2824
    %v2957 = vunpack.c.l.b16 %v2825
    %v2958 = vunpack.c.l.b16 %v2826
    %v2959 = vunpack.c.l.b16 %v2827
    %v2960 = vunpack.c.l.b16 %v2828
    %v2961 = vunpack.c.l.b16 %v2829
    %v2962 = vunpack.c.l.b16 %v2830
    %v2963 = vunpack.c.l.b16 %v2831
    %v2964 = vunpack.c.l.b16 %v2832
    %v2965 = vunpack.c.l.b16 %v2833
    %v2966 = vunpack.c.l.b16 %v2834
    %v2967 = vunpack.c.l.b16 %v2835
    %v2968 = vunpack.c.l.b16 %v2836
    %v2969 = vunpack.c.l.b16 %v2837
    %v2970 = vunpack.c.l.b16 %v2838
    %v2971 = vunpack.c.l.b16 %v2839
    %v2972 = vunpack.c.l.b16 %v2840
    %v2973 = vunpack.c.l.b16 %v2841
    %v2974 = vunpack.c.l.b16 %v2842
    %v2975 = vunpack.c.l.b16 %v2843
    %v2976 = vunpack.c.l.b16 %v2844
    %v2977 = vunpack.c.l.b16 %v2845
    %v2978 = vunpack.c.l.b16 %v2846
    %v2979 = vunpack.c.l.b16 %v2847
    %v2980 = vunpack.c.l.b16 %v2848
    %v2981 = vunpack.c.l.b16 %v2849
    %v2982 = vunpack.c.l.b16 %v2850
    %v2983 = vunpack.c.l.b16 %v2851
    %v2984 = vunpack.c.l.b16 %v2852
    %v2985 = vunpack.c.l.b16 %v2853
    %v2986 = vunpack.c.l.b16 %v2854
    %v2987 = vunpack.c.l.b16 %v2855
    %v2988 = vunpack.c.l.b16 %v2856
    %v2989 = vpack.c.b16 %v2926, %v2925
    %v2990 = vpack.c.b16 %v2928, %v2927
    %v2991 = vpack.c.b16 %v2930, %v2929
    %v2992 = vpack.c.b16 %v2932, %v2931
    %v2993 = vpack.c.b16 %v2934, %v2933
    %v2994 = vpack.c.b16 %v2936, %v2935
    %v2995 = vpack.c.b16 %v2938, %v2937
    %v2996 = vpack.c.b16 %v2940, %v2939
    %v2997 = vpack.c.b16 %v2942, %v2941
    %v2998 = vpack.c.b16 %v2944, %v2943
    %v2999 = vpack.c.b16 %v2946, %v2945
    %v3000 = vpack.c.b16 %v2948, %v2947
    %v3001 = vpack.c.b16 %v2950, %v2949
    %v3002 = vpack.c.b16 %v2952, %v2951
    %v3003 = vpack.c.b16 %v2954, %v2953
    %v3004 = vpack.c.b16 %v2956, %v2955
    %v3005 = vpack.c.b16 %v2958, %v2957
    %v3006 = vpack.c.b16 %v2960, %v2959
    %v3007 = vpack.c.b16 %v2962, %v2961
    %v3008 = vpack.c.b16 %v2964, %v2963
    %v3009 = vpack.c.b16 %v2966, %v2965
    %v3010 = vpack.c.b16 %v2968, %v2967
    %v3011 = vpack.c.b16 %v2970, %v2969
    %v3012 = vpack.c.b16 %v2972, %v2971
    %v3013 = vpack.c.b16 %v2974, %v2973
    %v3014 = vpack.c.b16 %v2976, %v2975
    %v3015 = vpack.c.b16 %v2978, %v2977
    %v3016 = vpack.c.b16 %v2980, %v2979
    %v3017 = vpack.c.b16 %v2982, %v2981
    %v3018 = vpack.c.b16 %v2984, %v2983
    %v3019 = vpack.c.b16 %v2986, %v2985
    %v3020 = vpack.c.b16 %v2988, %v2987
    %3053 = vmatpush.bf16.msra.mxu0 %v2996
    %3054 = vmatpush.bf16.msra.mxu0 %v2995
    %3055 = vmatpush.bf16.msra.mxu0 %v2994
    %3056 = vmatpush.bf16.msra.mxu0 %v2993
    %3057 = vmatpush.bf16.msra.mxu0 %v2992
    %3058 = vmatpush.bf16.msra.mxu0 %v2991
    %3059 = vmatpush.bf16.msra.mxu0 %v2990
    %3060 = vmatpush.bf16.msra.mxu0 %v2989
    %3061 = vmatmul.bf16.gmra.mxu0 %v2789
    %v3062 = vpop.f32.mrf.mxu0
    %v3063 = vadd.f32 %v2859, %v3062
    %v3064 = vpop.f32.mrf.mxu0
    %3065 = vdwg.mxu0
    %3066 = vmatpush.bf16.msra.mxu0 %v3004
    %3067 = vmatpush.bf16.msra.mxu0 %v3003
    %3068 = vmatpush.bf16.msra.mxu0 %v3002
    %3069 = vmatpush.bf16.msra.mxu0 %v3001
    %3070 = vmatpush.bf16.msra.mxu0 %v3000
    %3071 = vmatpush.bf16.msra.mxu0 %v2999
    %3072 = vmatpush.bf16.msra.mxu0 %v2998
    %3073 = vmatpush.bf16.msra.mxu0 %v2997
    %3074 = vmatmul.bf16.gmra.mxu0 %v2790
    %v3075 = vpop.f32.mrf.mxu0
    %v3076 = vadd.f32 %v3063, %v3075
    %v3077 = vpop.f32.mrf.mxu0
    %3078 = vdwg.mxu0
    %3079 = vmatpush.bf16.msra.mxu0 %v3012
    %3080 = vmatpush.bf16.msra.mxu0 %v3011
    %3081 = vmatpush.bf16.msra.mxu0 %v3010
    %3082 = vmatpush.bf16.msra.mxu0 %v3009
    %3083 = vmatpush.bf16.msra.mxu0 %v3008
    %3084 = vmatpush.bf16.msra.mxu0 %v3007
    %3085 = vmatpush.bf16.msra.mxu0 %v3006
    %3086 = vmatpush.bf16.msra.mxu0 %v3005
    %3087 = vmatmul.bf16.gmra.mxu0 %v2791
    %v3088 = vpop.f32.mrf.mxu0
    %v3089 = vadd.f32 %v3076, %v3088
    %v3090 = vpop.f32.mrf.mxu0
    %3091 = vdwg.mxu0
    %3092 = vmatpush.bf16.msra.mxu0 %v3020
    %3093 = vmatpush.bf16.msra.mxu0 %v3019
    %3094 = vmatpush.bf16.msra.mxu0 %v3018
    %3095 = vmatpush.bf16.msra.mxu0 %v3017
    %3096 = vmatpush.bf16.msra.mxu0 %v3016
    %3097 = vmatpush.bf16.msra.mxu0 %v3015
    %3098 = vmatpush.bf16.msra.mxu0 %v3014
    %3099 = vmatpush.bf16.msra.mxu0 %v3013
    %3100 = vmatmul.bf16.gmra.mxu0 %v2792
    %v3101 = vpop.f32.mrf.mxu0
    %v3102 = vadd.f32 %v3089, %v3101
    %v3103 = vpop.f32.mrf.mxu0
    %3104 = vdwg.mxu0
    %v3105 = vmul.f32 %v3102, %v3102
    %3106 = vadd.xlane.f32.xlu0 %v3105
    %v3107 = vpop.xlane.xlu0 %3106
    %v3108 = vmax.f32 %v3107, 1e-24
    %v3109 = vrsqrt.pop %v3108
    %v3110 = vmul.f32 %v3109, %v3108
    %v3111 = vmul.f32 %v3110, %v3109
    %v3112 = vmul.f32 0.5, %v3111
    %v3113 = vsub.f32 1.5, %v3112
    %v3114 = vmul.f32 %v3109, %v3113
    %vm3115 = vweird.f32 %v3108
    %vm3116 = vweird.f32 %v3109
    %vm3117 = vmor %vm3115, %vm3116
    %v3118 = vsel %vm3117, %v3109, %v3114
    %v3119 = vmul.f32 %v3102, %v3118
    %3120 = vst [vmem:[#allocation7] sm:$0xff] %v3119
    // Predicated region
    $region38: #{scl_forward.1} parent=1 // pred_check
      _
    $region39: #{scl_forward.1} parent=1 // pred_check_branch
      %3122 = sbr.rel (0) target = $region41
    $region40: #{scl_forward.1} parent=1 // pred_region
      %3124 = vsyncadd [#allocation4], 0
      %s3126 = sshll.u32 [#allocation7], 4
      %s3127 = int_to_ptr.vmem [resolvable:$true] %s3126
      %s3128 = sshll.u32 %s7, 4
      %s3129 = int_to_ptr.hbm [resolvable:$true] %s3128
      %3131 = dma.vmem_to_hbm [thread:$0]  %s3127, 128, %s3129, [#allocation4]
    $region41: #{scl_forward.1} parent=1 // pred_fallthru
      _
    // Predicated region
    $region42: #{scl_forward.1} parent=1 // pred_check
      _
    $region43: #{scl_forward.1} parent=1 // pred_check_branch
      %3133 = sbr.rel (0) target = $region45
    $region44: #{scl_forward.1} parent=1 // pred_region
      %3135 = dma.done [#allocation4], 128
    $region45: #{scl_forward.1} parent=1 // pred_fallthru
      _
    %3136 = vsyncpa [#allocation3], 1
    %3137 = vsyncpa [#allocation6], 1
    %3138 = vsyncpa [#allocation4], 1

</llo_original>
